<compile_context>
chip_gen: v5e
topology: v5e:2x2
jax: 0.10.0
libtpu: 0.0.40
codegen_flags: <defaults>
</compile_context>

<pallas_src>
import math
import jax
import jax.numpy as jnp
from jax import lax
from jax.experimental import pallas as pl
from jax.experimental.pallas import tpu as pltpu

# ---- scaled-down sizes (original: hidden=768, mlp=768, emb=300, neg=5) ------
B = 2          # batch
S = 8          # title sequence length (multiple of 8)
HIDDEN = 128   # bert hidden size      (768 in the original module)
MLP_H = 128    # mlp intermediate size (768 in the original module)
EMB = 128      # embedding_size        (300 -> pad to 384 lanes at real size)
VOCAB = 64     # vocab_size
NUM_NEG = 5    # number of negative skills


def _log_sigmoid(x):
    # numerically stable log(sigmoid(x)) = min(x, 0) - log1p(exp(-|x|))
    return jnp.minimum(x, 0.0) - jnp.log1p(jnp.exp(-jnp.abs(x)))


def jobbert_kernel(pos_ids_ref, neg_ids_ref,             # scalar prefetch (SMEM)
                   bert_ref, uj_ref,
                   uk0_ref, uk1_ref, uk2_ref, uk3_ref, uk4_ref,
                   wg_ref, w1_ref, b1_ref, w2_ref, b2_ref, bg_ref,
                   jt_ref, ll_ref):
    """One grid step == one batch element (the batch axis is 'parallel').

    bert_ref : (1, S, HIDDEN) bf16   bert last_hidden_state tile for batch b
    uj_ref   : (1, 1, EMB)    f32    gathered positive-skill embedding row
    uk*_ref  : (1, 1, EMB)    f32    gathered negative-skill embedding rows
    wg_ref   : (1, HIDDEN)    f32    gating weight row (resident)
    w1_ref   : (HIDDEN, MLP_H) bf16, b1_ref : (1, MLP_H) f32   (resident)
    w2_ref   : (MLP_H, EMB)    bf16, b2_ref : (1, EMB)   f32   (resident)
    bg_ref   : (1, 1) f32            gating bias (resident)
    jt_ref   : (1, 1, EMB) f32       J_T row for batch b
    ll_ref   : (1, 1, 1)   f32       J_T[b, target_b] (fused NLL gather)
    """
    del pos_ids_ref, neg_ids_ref   # consumed by the gather index_maps only

    # ---- gating: sigmoid(<bert, wg> + bg), f32 on VPU + XLU lane reduce -----
    bert = bert_ref[0].astype(jnp.float32)                         # (S, H)
    g = jnp.sum(bert * wg_ref[...], axis=-1, keepdims=True)        # (S, 1)
    x = jax.nn.sigmoid(g + bg_ref[...])                            # (S, 1)

    # ---- normalise over the sequence dim, scale bert states -----------------
    det = jnp.sum(x, axis=0, keepdims=True)                        # (1, 1)
    gating_scores = x / det                                        # exact divide
    ie = (gating_scores * bert).astype(jnp.bfloat16)               # (S, H) -> MXU

    # ---- mlp_layers: Linear -> ReLU -> Linear (MXU, bf16 in / f32 acc) ------
    h1 = jnp.dot(ie, w1_ref[...],
                 preferred_element_type=jnp.float32) + b1_ref[...]  # (S, MLP_H)
    h1 = jnp.maximum(h1, 0.0)
    e = jnp.dot(h1.astype(jnp.bfloat16), w2_ref[...],
                preferred_element_type=jnp.float32) + b2_ref[...]   # (S, EMB)

    # ---- positive / negative skill interactions (f32 VPU/EUP) ---------------
    uj = uj_ref[0]                                                  # (1, EMB)
    uk_sum = (uk0_ref[0] + uk1_ref[0] + uk2_ref[0]
              + uk3_ref[0] + uk4_ref[0])                            # (1, EMB)
    pos_matx = uj * e                                               # (S, EMB)
    neg_matx = -(uk_sum * e)                                        # == -(u_k*e).sum(dim=2)
    jt_row = jnp.sum(_log_sigmoid(pos_matx) + _log_sigmoid(neg_matx),
                     axis=0, keepdims=True)                         # (1, EMB) == J_T[b]
    jt_ref[...] = jt_row.reshape(1, 1, EMB)

    # ---- fused NLL: target = argmax(int(u_j)) (first max), pick J_T[target] -
    uji = uj.astype(jnp.int32)                                      # trunc toward zero
    lane = lax.broadcasted_iota(jnp.int32, (1, EMB), 1)
    maxv = jnp.max(uji, axis=1, keepdims=True)
    target = jnp.min(jnp.where(uji == maxv, lane, EMB),
                     axis=1, keepdims=True)                         # (1, 1) int32
    sel = jnp.sum(jnp.where(lane == target, jt_row, 0.0),
                  axis=1, keepdims=True)                            # (1, 1)
    ll_ref[...] = sel.reshape(1, 1, 1)


def jobbert_forward_pallas(bert_output, positive_skill, negative_skills, params):
    """Full forward. Returns (loss, J_T) with J_T of shape (B, EMB)."""
    pos_ids = positive_skill.reshape(B).astype(jnp.int32)
    neg_ids = negative_skills.reshape(B, NUM_NEG).astype(jnp.int32)
    emb3 = params["emb"].reshape(VOCAB, 1, EMB)       # (row, 1, EMB) so gathered
    bert_bf16 = bert_output.astype(jnp.bfloat16)      # halve the dominant DMA

    def const2(b, pos, neg):
        return (0, 0)

    grid_spec = pltpu.PrefetchScalarGridSpec(
        num_scalar_prefetch=2,                        # pos_ids, neg_ids -> SMEM
        grid=(B,),
        in_specs=[
            pl.BlockSpec((1, S, HIDDEN), lambda b, pos, neg: (b, 0, 0)),       # bert tile
            pl.BlockSpec((1, 1, EMB),    lambda b, pos, neg: (pos[b], 0, 0)),  # u_j gather
            *[pl.BlockSpec((1, 1, EMB),
                           (lambda b, pos, neg, k=k: (neg[b, k], 0, 0)))
              for k in range(NUM_NEG)],                                        # u_k gathers
            pl.BlockSpec((1, HIDDEN),     const2),    # wg  (resident across grid)
            pl.BlockSpec((HIDDEN, MLP_H), const2),    # w1  (resident)
            pl.BlockSpec((1, MLP_H),      const2),    # b1  (resident)
            pl.BlockSpec((MLP_H, EMB),    const2),    # w2  (resident)
            pl.BlockSpec((1, EMB),        const2),    # b2  (resident)
            pl.BlockSpec((1, 1),          const2),    # bg  (resident)
        ],
        out_specs=(
            pl.BlockSpec((1, 1, EMB), lambda b, pos, neg: (b, 0, 0)),
            pl.BlockSpec((1, 1, 1),   lambda b, pos, neg: (b, 0, 0)),
        ),
    )

    jt3, ll3 = pl.pallas_call(
        jobbert_kernel,
        grid_spec=grid_spec,
        out_shape=(jax.ShapeDtypeStruct((B, 1, EMB), jnp.float32),
                   jax.ShapeDtypeStruct((B, 1, 1), jnp.float32)),
        compiler_params=pltpu.CompilerParams(
            dimension_semantics=("parallel",)),
    )(pos_ids, neg_ids, bert_bf16, emb3, emb3, emb3, emb3, emb3, emb3,
      params["wg"], params["w1"], params["b1"], params["w2"], params["b2"],
      params["bg"])

    jt = jt3[:, 0, :]                                  # (B, EMB)
    loss = -jnp.mean(ll3[:, 0, 0])                     # NLLLoss(mean reduction)
    return loss, jt


def reference_forward(bert_output, positive_skill, negative_skills, params):
    """Pure-JAX f32 reference mirroring the PyTorch module (for validation)."""
    emb = params["emb"]
    u_j = jnp.take(emb, positive_skill, axis=0)               # (B, 1, EMB)
    u_k = jnp.take(emb, negative_skills, axis=0)              # (B, 1, NEG, EMB)
    w1 = params["w1"].astype(jnp.float32)
    w2 = params["w2"].astype(jnp.float32)
    x = jax.nn.sigmoid(jnp.einsum("bsh,oh->bso", bert_output, params["wg"])
                       + params["bg"][0, 0])                  # (B, S, 1)
    det = jnp.sum(x, axis=1, keepdims=True)                   # (B, 1, 1)
    gating = x / det
    ie = gating * bert_output
    h1 = jnp.maximum(jnp.einsum("bsh,hm->bsm", ie, w1) + params["b1"], 0.0)
    e = jnp.einsum("bsm,me->bse", h1, w2) + params["b2"]      # (B, S, EMB)
    pos_matx = u_j * e
    neg_matx = -jnp.sum(u_k * e[:, :, None, :], axis=2)
    jt = jnp.sum(_log_sigmoid(pos_matx) + _log_sigmoid(neg_matx), axis=1)  # (B, EMB)
    target = jnp.argmax(u_j.reshape(B, EMB).astype(jnp.int32), axis=1)
    loss = -jnp.mean(jt[jnp.arange(B), target])
    return loss, jt


def init_params(key):
    """Deterministic init mirroring _init_weights (uniform ranges) and the
    default N(0,1) Embedding init; MLP weights stored (in, out), bf16 for MXU."""
    k_emb, k_wg, k_bg, k_w1, k_b1, k_w2, k_b2 = jax.random.split(key, 7)
    wlim = math.sqrt(1.0 / HIDDEN)   # analogue of sqrt(1/768)
    blim = math.sqrt(1.0 / EMB)      # analogue of sqrt(1/300)
    return {
        "emb": jax.random.normal(k_emb, (VOCAB, EMB), jnp.float32),
        "wg": jax.random.uniform(k_wg, (1, HIDDEN), jnp.float32, -wlim, wlim),
        "bg": jax.random.uniform(k_bg, (1, 1), jnp.float32, -blim, blim),
        "w1": jax.random.uniform(k_w1, (HIDDEN, MLP_H), jnp.float32,
                                 -wlim, wlim).astype(jnp.bfloat16),
        "b1": jax.random.uniform(k_b1, (1, MLP_H), jnp.float32, -blim, blim),
        "w2": jax.random.uniform(k_w2, (MLP_H, EMB), jnp.float32,
                                 -wlim, wlim).astype(jnp.bfloat16),
        "b2": jax.random.uniform(k_b2, (1, EMB), jnp.float32, -blim, blim),
    }


if __name__ == "__main__":
    key = jax.random.PRNGKey(0)
    k_params, k_bert, k_pos, k_neg = jax.random.split(key, 4)

    params = init_params(k_params)

    # stand-in for BertModel(...)['last_hidden_state']
    bert_output = jax.random.normal(k_bert, (B, S, HIDDEN), jnp.float32)
    positive_skill = jax.random.randint(k_pos, (B, 1), 0, VOCAB)
    negative_skills = jax.random.randint(k_neg, (B, 1, NUM_NEG), 0, VOCAB)

    loss, jt = jobbert_forward_pallas(bert_output, positive_skill,
                                      negative_skills, params)
    loss = jax.block_until_ready(loss)

    ref_loss, ref_jt = reference_forward(bert_output, positive_skill,
                                         negative_skills, params)
    assert loss.shape == () and bool(jnp.isfinite(loss))
    assert bool(jnp.allclose(loss, ref_loss, rtol=5e-2, atol=5e-2)), (loss, ref_loss)
    assert bool(jnp.allclose(jt, ref_jt, rtol=5e-2, atol=5e-2))
    print("KERNEL_OK")
</pallas_src>

<mosaic_0001>
module attributes {stable_mosaic.version = 11 : i64} {
  func.func @jobbert_kernel(%arg0: i32, %arg1: memref<2xi32, #tpu.memory_space<smem>>, %arg2: memref<2x5xi32, #tpu.memory_space<smem>>, %arg3: memref<1x8x128xbf16, #tpu.memory_space<vmem>>, %arg4: memref<1x1x128xf32, #tpu.memory_space<vmem>>, %arg5: memref<1x1x128xf32, #tpu.memory_space<vmem>>, %arg6: memref<1x1x128xf32, #tpu.memory_space<vmem>>, %arg7: memref<1x1x128xf32, #tpu.memory_space<vmem>>, %arg8: memref<1x1x128xf32, #tpu.memory_space<vmem>>, %arg9: memref<1x1x128xf32, #tpu.memory_space<vmem>>, %arg10: memref<1x128xf32, #tpu.memory_space<vmem>>, %arg11: memref<128x128xbf16, #tpu.memory_space<vmem>>, %arg12: memref<1x128xf32, #tpu.memory_space<vmem>>, %arg13: memref<128x128xbf16, #tpu.memory_space<vmem>>, %arg14: memref<1x128xf32, #tpu.memory_space<vmem>>, %arg15: memref<1x1xf32, #tpu.memory_space<vmem>>, %arg16: memref<1x1x128xf32, #tpu.memory_space<vmem>>, %arg17: memref<1x1x1xf32, #tpu.memory_space<vmem>>) attributes {dimension_semantics = [#tpu.dimension_semantics<parallel>], iteration_bounds = array<i64: 2>, scalar_prefetch = 2 : i64, scratch_operands = 0 : i64, tpu.core_type = #tpu.core_type<tc>, window_params = [{transform_indices = @transform_0, window_bounds = array<i64: 1, 8, 128>}, {transform_indices = @transform_1, window_bounds = array<i64: 1, 1, 128>}, {transform_indices = @transform_2, window_bounds = array<i64: 1, 1, 128>}, {transform_indices = @transform_3, window_bounds = array<i64: 1, 1, 128>}, {transform_indices = @transform_4, window_bounds = array<i64: 1, 1, 128>}, {transform_indices = @transform_5, window_bounds = array<i64: 1, 1, 128>}, {transform_indices = @transform_6, window_bounds = array<i64: 1, 1, 128>}, {pipeline_mode = #tpu.pipeline_mode<synchronous>, transform_indices = @transform_7, window_bounds = array<i64: 1, 128>}, {pipeline_mode = #tpu.pipeline_mode<synchronous>, transform_indices = @transform_8, window_bounds = array<i64: 128, 128>}, {pipeline_mode = #tpu.pipeline_mode<synchronous>, transform_indices = @transform_9, window_bounds = array<i64: 1, 128>}, {pipeline_mode = #tpu.pipeline_mode<synchronous>, transform_indices = @transform_10, window_bounds = array<i64: 128, 128>}, {pipeline_mode = #tpu.pipeline_mode<synchronous>, transform_indices = @transform_11, window_bounds = array<i64: 1, 128>}, {pipeline_mode = #tpu.pipeline_mode<synchronous>, transform_indices = @transform_12, window_bounds = array<i64: 1, 1>}, {transform_indices = @transform_13, window_bounds = array<i64: 1, 1, 128>}, {transform_indices = @transform_14, window_bounds = array<i64: 1, 1, 1>}]} {
    %c0 = arith.constant 0 : index
    %c0_0 = arith.constant 0 : index
    %c0_1 = arith.constant 0 : index
    %0 = vector.load %arg3[%c0, %c0_0, %c0_1] : memref<1x8x128xbf16, #tpu.memory_space<vmem>>, vector<1x8x128xbf16>
    %1 = vector.shape_cast %0 : vector<1x8x128xbf16> to vector<8x128xbf16>
    %2 = arith.extf %1 : vector<8x128xbf16> to vector<8x128xf32>
    %c0_2 = arith.constant 0 : index
    %c0_3 = arith.constant 0 : index
    %3 = vector.load %arg10[%c0_2, %c0_3] : memref<1x128xf32, #tpu.memory_space<vmem>>, vector<1x128xf32>
    %4 = vector.broadcast %3 : vector<1x128xf32> to vector<8x128xf32>
    %5 = arith.mulf %2, %4 : vector<8x128xf32>
    %cst = arith.constant dense<0.000000e+00> : vector<8xf32>
    %6 = vector.multi_reduction <add>, %5, %cst [1] : vector<8x128xf32> to vector<8xf32>
    %7 = vector.shape_cast %6 : vector<8xf32> to vector<8x1xf32>
    %c0_4 = arith.constant 0 : index
    %c0_5 = arith.constant 0 : index
    %8 = vector.load %arg15[%c0_4, %c0_5] : memref<1x1xf32, #tpu.memory_space<vmem>>, vector<1x1xf32>
    %9 = vector.broadcast %8 : vector<1x1xf32> to vector<8x1xf32>
    %10 = arith.addf %7, %9 : vector<8x1xf32>
    %11 = arith.negf %10 : vector<8x1xf32>
    %12 = math.exp %11 : vector<8x1xf32>
    %cst_6 = arith.constant 1.000000e+00 : f32
    %13 = vector.broadcast %cst_6 : f32 to vector<8x1xf32>
    %14 = arith.addf %13, %12 : vector<8x1xf32>
    %15 = arith.divf %13, %14 : vector<8x1xf32>
    %cst_7 = arith.constant dense<0.000000e+00> : vector<1xf32>
    %16 = vector.multi_reduction <add>, %15, %cst_7 [0] : vector<8x1xf32> to vector<1xf32>
    %17 = vector.shape_cast %16 : vector<1xf32> to vector<1x1xf32>
    %18 = vector.broadcast %17 : vector<1x1xf32> to vector<8x1xf32>
    %19 = arith.divf %15, %18 : vector<8x1xf32>
    %20 = vector.broadcast %19 : vector<8x1xf32> to vector<8x128xf32>
    %21 = arith.mulf %20, %2 : vector<8x128xf32>
    %22 = arith.truncf %21 : vector<8x128xf32> to vector<8x128xbf16>
    %c0_8 = arith.constant 0 : index
    %c0_9 = arith.constant 0 : index
    %23 = vector.load %arg11[%c0_8, %c0_9] : memref<128x128xbf16, #tpu.memory_space<vmem>>, vector<128x128xbf16>
    %cst_10 = arith.constant dense<0.000000e+00> : vector<8x128xf32>
    %24 = tpu.matmul %22, %23, %cst_10 {dimension_numbers = #tpu.dot_dimension_numbers<[1], [0], [0], [1], [0, 0, 1, 1], [], []>} : vector<8x128xbf16>, vector<128x128xbf16>, vector<8x128xf32> -> vector<8x128xf32>
    %c0_11 = arith.constant 0 : index
    %c0_12 = arith.constant 0 : index
    %25 = vector.load %arg12[%c0_11, %c0_12] : memref<1x128xf32, #tpu.memory_space<vmem>>, vector<1x128xf32>
    %26 = vector.broadcast %25 : vector<1x128xf32> to vector<8x128xf32>
    %27 = arith.addf %24, %26 : vector<8x128xf32>
    %cst_13 = arith.constant 0.000000e+00 : f32
    %28 = vector.broadcast %cst_13 : f32 to vector<8x128xf32>
    %29 = arith.maximumf %27, %28 : vector<8x128xf32>
    %30 = arith.truncf %29 : vector<8x128xf32> to vector<8x128xbf16>
    %c0_14 = arith.constant 0 : index
    %c0_15 = arith.constant 0 : index
    %31 = vector.load %arg13[%c0_14, %c0_15] : memref<128x128xbf16, #tpu.memory_space<vmem>>, vector<128x128xbf16>
    %cst_16 = arith.constant dense<0.000000e+00> : vector<8x128xf32>
    %32 = tpu.matmul %30, %31, %cst_16 {dimension_numbers = #tpu.dot_dimension_numbers<[1], [0], [0], [1], [0, 0, 1, 1], [], []>} : vector<8x128xbf16>, vector<128x128xbf16>, vector<8x128xf32> -> vector<8x128xf32>
    %c0_17 = arith.constant 0 : index
    %c0_18 = arith.constant 0 : index
    %33 = vector.load %arg14[%c0_17, %c0_18] : memref<1x128xf32, #tpu.memory_space<vmem>>, vector<1x128xf32>
    %34 = vector.broadcast %33 : vector<1x128xf32> to vector<8x128xf32>
    %35 = arith.addf %32, %34 : vector<8x128xf32>
    %c0_19 = arith.constant 0 : index
    %c0_20 = arith.constant 0 : index
    %c0_21 = arith.constant 0 : index
    %36 = vector.load %arg4[%c0_19, %c0_20, %c0_21] : memref<1x1x128xf32, #tpu.memory_space<vmem>>, vector<1x1x128xf32>
    %37 = vector.shape_cast %36 : vector<1x1x128xf32> to vector<1x128xf32>
    %c0_22 = arith.constant 0 : index
    %c0_23 = arith.constant 0 : index
    %c0_24 = arith.constant 0 : index
    %38 = vector.load %arg5[%c0_22, %c0_23, %c0_24] : memref<1x1x128xf32, #tpu.memory_space<vmem>>, vector<1x1x128xf32>
    %39 = vector.shape_cast %38 : vector<1x1x128xf32> to vector<1x128xf32>
    %c0_25 = arith.constant 0 : index
    %c0_26 = arith.constant 0 : index
    %c0_27 = arith.constant 0 : index
    %40 = vector.load %arg6[%c0_25, %c0_26, %c0_27] : memref<1x1x128xf32, #tpu.memory_space<vmem>>, vector<1x1x128xf32>
    %41 = vector.shape_cast %40 : vector<1x1x128xf32> to vector<1x128xf32>
    %42 = arith.addf %39, %41 : vector<1x128xf32>
    %c0_28 = arith.constant 0 : index
    %c0_29 = arith.constant 0 : index
    %c0_30 = arith.constant 0 : index
    %43 = vector.load %arg7[%c0_28, %c0_29, %c0_30] : memref<1x1x128xf32, #tpu.memory_space<vmem>>, vector<1x1x128xf32>
    %44 = vector.shape_cast %43 : vector<1x1x128xf32> to vector<1x128xf32>
    %45 = arith.addf %42, %44 : vector<1x128xf32>
    %c0_31 = arith.constant 0 : index
    %c0_32 = arith.constant 0 : index
    %c0_33 = arith.constant 0 : index
    %46 = vector.load %arg8[%c0_31, %c0_32, %c0_33] : memref<1x1x128xf32, #tpu.memory_space<vmem>>, vector<1x1x128xf32>
    %47 = vector.shape_cast %46 : vector<1x1x128xf32> to vector<1x128xf32>
    %48 = arith.addf %45, %47 : vector<1x128xf32>
    %c0_34 = arith.constant 0 : index
    %c0_35 = arith.constant 0 : index
    %c0_36 = arith.constant 0 : index
    %49 = vector.load %arg9[%c0_34, %c0_35, %c0_36] : memref<1x1x128xf32, #tpu.memory_space<vmem>>, vector<1x1x128xf32>
    %50 = vector.shape_cast %49 : vector<1x1x128xf32> to vector<1x128xf32>
    %51 = arith.addf %48, %50 : vector<1x128xf32>
    %52 = vector.broadcast %37 : vector<1x128xf32> to vector<8x128xf32>
    %53 = arith.mulf %52, %35 : vector<8x128xf32>
    %54 = vector.broadcast %51 : vector<1x128xf32> to vector<8x128xf32>
    %55 = arith.mulf %54, %35 : vector<8x128xf32>
    %cst_37 = arith.constant 0.000000e+00 : f32
    %56 = vector.broadcast %cst_37 : f32 to vector<8x128xf32>
    %57 = arith.subf %56, %55 : vector<8x128xf32>
    %cst_38 = arith.constant 0.000000e+00 : f32
    %58 = vector.broadcast %cst_38 : f32 to vector<8x128xf32>
    %59 = arith.minimumf %53, %58 : vector<8x128xf32>
    %60 = math.absf %53 : vector<8x128xf32>
    %cst_39 = arith.constant 0.000000e+00 : f32
    %61 = vector.broadcast %cst_39 : f32 to vector<8x128xf32>
    %62 = arith.subf %61, %60 : vector<8x128xf32>
    %63 = math.exp %62 : vector<8x128xf32>
    %64 = math.log1p %63 : vector<8x128xf32>
    %65 = arith.subf %59, %64 : vector<8x128xf32>
    %cst_40 = arith.constant 0.000000e+00 : f32
    %66 = vector.broadcast %cst_40 : f32 to vector<8x128xf32>
    %67 = arith.minimumf %57, %66 : vector<8x128xf32>
    %68 = math.absf %57 : vector<8x128xf32>
    %cst_41 = arith.constant 0.000000e+00 : f32
    %69 = vector.broadcast %cst_41 : f32 to vector<8x128xf32>
    %70 = arith.subf %69, %68 : vector<8x128xf32>
    %71 = math.exp %70 : vector<8x128xf32>
    %72 = math.log1p %71 : vector<8x128xf32>
    %73 = arith.subf %67, %72 : vector<8x128xf32>
    %74 = arith.addf %65, %73 : vector<8x128xf32>
    %cst_42 = arith.constant dense<0.000000e+00> : vector<128xf32>
    %75 = vector.multi_reduction <add>, %74, %cst_42 [0] : vector<8x128xf32> to vector<128xf32>
    %76 = vector.shape_cast %75 : vector<128xf32> to vector<1x128xf32>
    %77 = vector.shape_cast %76 : vector<1x128xf32> to vector<1x1x128xf32>
    %c0_43 = arith.constant 0 : index
    %c0_44 = arith.constant 0 : index
    %c0_45 = arith.constant 0 : index
    %78 = vector.load %arg16[%c0_43, %c0_44, %c0_45] : memref<1x1x128xf32, #tpu.memory_space<vmem>>, vector<1x1x128xf32>
    tpu.vector_store %arg16[%c0_43, %c0_44, %c0_45], %77 {strides = array<i32>} : memref<1x1x128xf32, #tpu.memory_space<vmem>>, vector<1x1x128xf32>,
    %79 = arith.fptosi %37 : vector<1x128xf32> to vector<1x128xi32>
    %80 = tpu.iota {dimensions = array<i32: 1>} : vector<1x128xi32>
    %cst_46 = arith.constant dense<-2147483648> : vector<1xi32>
    %81 = vector.multi_reduction <maxsi>, %79, %cst_46 [1] : vector<1x128xi32> to vector<1xi32>
    %82 = vector.shape_cast %81 : vector<1xi32> to vector<1x1xi32>
    %83 = vector.broadcast %82 : vector<1x1xi32> to vector<1x128xi32>
    %84 = arith.cmpi eq, %79, %83 : vector<1x128xi32>
    %c128_i32 = arith.constant 128 : i32
    %85 = vector.broadcast %c128_i32 : i32 to vector<1x128xi32>
    %86 = arith.select %84, %80, %85 : vector<1x128xi1>, vector<1x128xi32>
    %cst_47 = arith.constant dense<2147483647> : vector<1xi32>
    %87 = vector.multi_reduction <minsi>, %86, %cst_47 [1] : vector<1x128xi32> to vector<1xi32>
    %88 = vector.shape_cast %87 : vector<1xi32> to vector<1x1xi32>
    %89 = vector.broadcast %88 : vector<1x1xi32> to vector<1x128xi32>
    %90 = arith.cmpi eq, %80, %89 : vector<1x128xi32>
    %cst_48 = arith.constant 0.000000e+00 : f32
    %91 = vector.broadcast %cst_48 : f32 to vector<1x128xf32>
    %92 = arith.select %90, %76, %91 : vector<1x128xi1>, vector<1x128xf32>
    %cst_49 = arith.constant dense<0.000000e+00> : vector<1xf32>
    %93 = vector.multi_reduction <add>, %92, %cst_49 [1] : vector<1x128xf32> to vector<1xf32>
    %94 = vector.shape_cast %93 : vector<1xf32> to vector<1x1xf32>
    %95 = vector.shape_cast %94 : vector<1x1xf32> to vector<1x1x1xf32>
    %c0_50 = arith.constant 0 : index
    %c0_51 = arith.constant 0 : index
    %c0_52 = arith.constant 0 : index
    %96 = vector.load %arg17[%c0_50, %c0_51, %c0_52] : memref<1x1x1xf32, #tpu.memory_space<vmem>>, vector<1x1x1xf32>
    tpu.vector_store %arg17[%c0_50, %c0_51, %c0_52], %95 {strides = array<i32>} : memref<1x1x1xf32, #tpu.memory_space<vmem>>, vector<1x1x1xf32>,
    return
  }
  func.func @transform_0(%arg0: i32, %arg1: memref<2xi32, #tpu.memory_space<smem>>, %arg2: memref<2x5xi32, #tpu.memory_space<smem>>) -> (i32, i32, i32) {
    %c0_i32 = arith.constant 0 : i32
    %c0_i32_0 = arith.constant 0 : i32
    %c0_i32_1 = arith.constant 0 : i32
    return %arg0, %c0_i32, %c0_i32_0 : i32, i32, i32
  }
  func.func @transform_1(%arg0: i32, %arg1: memref<2xi32, #tpu.memory_space<smem>>, %arg2: memref<2x5xi32, #tpu.memory_space<smem>>) -> (i32, i32, i32) {
    %0 = arith.index_cast %arg0 : i32 to index
    %1 = memref.load %arg1[%0] : memref<2xi32, #tpu.memory_space<smem>>
    %c0_i32 = arith.constant 0 : i32
    %c0_i32_0 = arith.constant 0 : i32
    %c0_i32_1 = arith.constant 0 : i32
    return %1, %c0_i32, %c0_i32_0 : i32, i32, i32
  }
  func.func @transform_2(%arg0: i32, %arg1: memref<2xi32, #tpu.memory_space<smem>>, %arg2: memref<2x5xi32, #tpu.memory_space<smem>>) -> (i32, i32, i32) {
    %0 = arith.index_cast %arg0 : i32 to index
    %c0 = arith.constant 0 : index
    %1 = memref.load %arg2[%0, %c0] : memref<2x5xi32, #tpu.memory_space<smem>>
    %c0_i32 = arith.constant 0 : i32
    %c0_i32_0 = arith.constant 0 : i32
    %c0_i32_1 = arith.constant 0 : i32
    return %1, %c0_i32, %c0_i32_0 : i32, i32, i32
  }
  func.func @transform_3(%arg0: i32, %arg1: memref<2xi32, #tpu.memory_space<smem>>, %arg2: memref<2x5xi32, #tpu.memory_space<smem>>) -> (i32, i32, i32) {
    %0 = arith.index_cast %arg0 : i32 to index
    %c1 = arith.constant 1 : index
    %1 = memref.load %arg2[%0, %c1] : memref<2x5xi32, #tpu.memory_space<smem>>
    %c0_i32 = arith.constant 0 : i32
    %c0_i32_0 = arith.constant 0 : i32
    %c0_i32_1 = arith.constant 0 : i32
    return %1, %c0_i32, %c0_i32_0 : i32, i32, i32
  }
  func.func @transform_4(%arg0: i32, %arg1: memref<2xi32, #tpu.memory_space<smem>>, %arg2: memref<2x5xi32, #tpu.memory_space<smem>>) -> (i32, i32, i32) {
    %0 = arith.index_cast %arg0 : i32 to index
    %c2 = arith.constant 2 : index
    %1 = memref.load %arg2[%0, %c2] : memref<2x5xi32, #tpu.memory_space<smem>>
    %c0_i32 = arith.constant 0 : i32
    %c0_i32_0 = arith.constant 0 : i32
    %c0_i32_1 = arith.constant 0 : i32
    return %1, %c0_i32, %c0_i32_0 : i32, i32, i32
  }
  func.func @transform_5(%arg0: i32, %arg1: memref<2xi32, #tpu.memory_space<smem>>, %arg2: memref<2x5xi32, #tpu.memory_space<smem>>) -> (i32, i32, i32) {
    %0 = arith.index_cast %arg0 : i32 to index
    %c3 = arith.constant 3 : index
    %1 = memref.load %arg2[%0, %c3] : memref<2x5xi32, #tpu.memory_space<smem>>
    %c0_i32 = arith.constant 0 : i32
    %c0_i32_0 = arith.constant 0 : i32
    %c0_i32_1 = arith.constant 0 : i32
    return %1, %c0_i32, %c0_i32_0 : i32, i32, i32
  }
  func.func @transform_6(%arg0: i32, %arg1: memref<2xi32, #tpu.memory_space<smem>>, %arg2: memref<2x5xi32, #tpu.memory_space<smem>>) -> (i32, i32, i32) {
    %0 = arith.index_cast %arg0 : i32 to index
    %c4 = arith.constant 4 : index
    %1 = memref.load %arg2[%0, %c4] : memref<2x5xi32, #tpu.memory_space<smem>>
    %c0_i32 = arith.constant 0 : i32
    %c0_i32_0 = arith.constant 0 : i32
    %c0_i32_1 = arith.constant 0 : i32
    return %1, %c0_i32, %c0_i32_0 : i32, i32, i32
  }
  func.func @transform_7(%arg0: i32, %arg1: memref<2xi32, #tpu.memory_space<smem>>, %arg2: memref<2x5xi32, #tpu.memory_space<smem>>) -> (i32, i32) {
    %c0_i32 = arith.constant 0 : i32
    %c0_i32_0 = arith.constant 0 : i32
    %c0_i32_1 = arith.constant 0 : i32
    return %c0_i32, %c0_i32_0 : i32, i32
  }
  func.func @transform_8(%arg0: i32, %arg1: memref<2xi32, #tpu.memory_space<smem>>, %arg2: memref<2x5xi32, #tpu.memory_space<smem>>) -> (i32, i32) {
    %c0_i32 = arith.constant 0 : i32
    %c0_i32_0 = arith.constant 0 : i32
    %c0_i32_1 = arith.constant 0 : i32
    return %c0_i32, %c0_i32_0 : i32, i32
  }
  func.func @transform_9(%arg0: i32, %arg1: memref<2xi32, #tpu.memory_space<smem>>, %arg2: memref<2x5xi32, #tpu.memory_space<smem>>) -> (i32, i32) {
    %c0_i32 = arith.constant 0 : i32
    %c0_i32_0 = arith.constant 0 : i32
    %c0_i32_1 = arith.constant 0 : i32
    return %c0_i32, %c0_i32_0 : i32, i32
  }
  func.func @transform_10(%arg0: i32, %arg1: memref<2xi32, #tpu.memory_space<smem>>, %arg2: memref<2x5xi32, #tpu.memory_space<smem>>) -> (i32, i32) {
    %c0_i32 = arith.constant 0 : i32
    %c0_i32_0 = arith.constant 0 : i32
    %c0_i32_1 = arith.constant 0 : i32
    return %c0_i32, %c0_i32_0 : i32, i32
  }
  func.func @transform_11(%arg0: i32, %arg1: memref<2xi32, #tpu.memory_space<smem>>, %arg2: memref<2x5xi32, #tpu.memory_space<smem>>) -> (i32, i32) {
    %c0_i32 = arith.constant 0 : i32
    %c0_i32_0 = arith.constant 0 : i32
    %c0_i32_1 = arith.constant 0 : i32
    return %c0_i32, %c0_i32_0 : i32, i32
  }
  func.func @transform_12(%arg0: i32, %arg1: memref<2xi32, #tpu.memory_space<smem>>, %arg2: memref<2x5xi32, #tpu.memory_space<smem>>) -> (i32, i32) {
    %c0_i32 = arith.constant 0 : i32
    %c0_i32_0 = arith.constant 0 : i32
    %c0_i32_1 = arith.constant 0 : i32
    return %c0_i32, %c0_i32_0 : i32, i32
  }
  func.func @transform_13(%arg0: i32, %arg1: memref<2xi32, #tpu.memory_space<smem>>, %arg2: memref<2x5xi32, #tpu.memory_space<smem>>) -> (i32, i32, i32) {
    %c0_i32 = arith.constant 0 : i32
    %c0_i32_0 = arith.constant 0 : i32
    %c0_i32_1 = arith.constant 0 : i32
    return %arg0, %c0_i32, %c0_i32_0 : i32, i32, i32
  }
  func.func @transform_14(%arg0: i32, %arg1: memref<2xi32, #tpu.memory_space<smem>>, %arg2: memref<2x5xi32, #tpu.memory_space<smem>>) -> (i32, i32, i32) {
    %c0_i32 = arith.constant 0 : i32
    %c0_i32_0 = arith.constant 0 : i32
    %c0_i32_1 = arith.constant 0 : i32
    return %arg0, %c0_i32, %c0_i32_0 : i32, i32, i32
  }
}

</mosaic_0001>

<llo_original>
// kernel: tpu_custom_call.1
$region0: #{tpu_custom_call.1}
  #allocation0 [shape = 'u32[]', space=smem, size = 0x4, offset = 0x4, fixed_abs, tag = 'smem constant byte address 0x4 - core index']
  #allocation1 [shape = 'u32[72,128]{1,0:T(1,128)}', space=vmem, size = 0x9000, scoped, tag = 'internal scratch']
  #allocation2 [shape = 's32[1]{0}', space=sflag, size = 0x4, scoped, tag = 'scoped memory for tpu_custom_call.1']
  #allocation3 [shape = 'u8[512]{0}', space=smem, size = 0x200, scoped, tag = 'prefetched SMEM operand 0']
  #allocation4 [shape = 'u8[1024]{0}', space=smem, size = 0x400, scoped, tag = 'prefetched SMEM operand 1']
  #allocation5 [shape = 'f32[1,1]{1,0:T(1,128)S(1)}', space=vmem, size = 0x200, scoped, tag = 'scoped memory for tpu_custom_call.1']
  %s0 = inlined_call_operand.hbm [shape: s32[2], index: 0, kind: input, shape index: {}]
  %s1 = inlined_call_operand.vmem [shape: s32[2,5], index: 1, kind: input, shape index: {}]
  %s2 = inlined_call_operand.hbm [shape: bf16[2,8,128], index: 2, kind: input, shape index: {}]
  %s3 = inlined_call_operand.hbm [shape: f32[64,1,128], index: 3, kind: input, shape index: {}]
  %s4 = inlined_call_operand.hbm [shape: f32[64,1,128], index: 4, kind: input, shape index: {}]
  %s5 = inlined_call_operand.hbm [shape: f32[64,1,128], index: 5, kind: input, shape index: {}]
  %s6 = inlined_call_operand.hbm [shape: f32[64,1,128], index: 6, kind: input, shape index: {}]
  %s7 = inlined_call_operand.hbm [shape: f32[64,1,128], index: 7, kind: input, shape index: {}]
  %s8 = inlined_call_operand.hbm [shape: f32[64,1,128], index: 8, kind: input, shape index: {}]
  %s9 = inlined_call_operand.vmem [shape: f32[1,128], index: 9, kind: input, shape index: {}]
  %s10 = inlined_call_operand.hbm [shape: bf16[128,128], index: 10, kind: input, shape index: {}]
  %s11 = inlined_call_operand.vmem [shape: f32[1,128], index: 11, kind: input, shape index: {}]
  %s12 = inlined_call_operand.hbm [shape: bf16[128,128], index: 12, kind: input, shape index: {}]
  %s13 = inlined_call_operand.vmem [shape: f32[1,128], index: 13, kind: input, shape index: {}]
  %s14 = inlined_call_operand.<no memory space> [shape: f32[1,1], index: 14, kind: input, shape index: {}]
  %s15 = inlined_call_operand.hbm [shape: f32[2,1,128], index: 15, kind: output, shape index: {0}]
  %s16 = inlined_call_operand.vmem [shape: f32[2,1,1], index: 16, kind: output, shape index: {1}]
  %17 = xla_tuple %s15, %s16
  %s18 = sld [smem:[#allocation0]]
  $region129: #{tpu_custom_call.1} parent=0
    _
  %s20 = ssub.s32 1, %s18
  %s21 = scalar_select 0, %s20, %s18
  %s23 = sshll.u32 %s0, 4
  %s24 = int_to_ptr.hbm [resolvable:$true] %s23
  %26 = dma.hbm_to_smem %s24, 16, [#allocation3], [#allocation2]
  %s28 = sshll.u32 %s1, 4
  %s29 = int_to_ptr.vmem [resolvable:$true] %s28
  %31 = dma.vmem_to_smem %s29, 32, [#allocation4], [#allocation2]
  %v32 = vstv %s14
  %33 = vst [vmem:[#allocation5] sm:$0x1] %v32
  %35 = dma.done [#allocation2], 48
  %36 = sfence
  $region1: #{tpu_custom_call.1} parent=0
    #allocation6 [shape = 'u8[4096]{0}', space=vmem, size = 0x1000, scoped, tag = 'input window, operand 2']
    #allocation7 [shape = 's32[2]{0}', space=sflag, size = 0x8, scoped, tag = 'scoped memory for tpu_custom_call.1']
    #allocation8 [shape = 's32[2]{0}', space=sflag, size = 0x8, scoped, tag = 'scoped memory for tpu_custom_call.1']
    #allocation9 [shape = 'u8[1024]{0}', space=vmem, size = 0x400, scoped, tag = 'input window, operand 3']
    #allocation10 [shape = 's32[2]{0}', space=sflag, size = 0x8, scoped, tag = 'scoped memory for tpu_custom_call.1']
    #allocation11 [shape = 'u8[1024]{0}', space=vmem, size = 0x400, scoped, tag = 'input window, operand 4']
    #allocation12 [shape = 'u8[1024]{0}', space=vmem, size = 0x400, scoped, tag = 'input window, operand 5']
    #allocation13 [shape = 's32[2]{0}', space=sflag, size = 0x8, scoped, tag = 'scoped memory for tpu_custom_call.1']
    #allocation14 [shape = 'u8[1024]{0}', space=vmem, size = 0x400, scoped, tag = 'input window, operand 6']
    #allocation15 [shape = 'u8[1024]{0}', space=vmem, size = 0x400, scoped, tag = 'input window, operand 7']
    #allocation16 [shape = 's32[2]{0}', space=sflag, size = 0x8, scoped, tag = 'scoped memory for tpu_custom_call.1']
    #allocation17 [shape = 'u8[1024]{0}', space=vmem, size = 0x400, scoped, tag = 'input window, operand 8']
    #allocation18 [shape = 'u8[32768]{0}', space=vmem, size = 0x8000, scoped, tag = 'input window, operand 10, single buffered']
    #allocation19 [shape = 's32[1]{0}', space=sflag, size = 0x4, scoped, tag = 'scoped memory for tpu_custom_call.1']
    #allocation20 [shape = 'u8[32768]{0}', space=vmem, size = 0x8000, scoped, tag = 'input window, operand 12, single buffered']
    #allocation21 [shape = 'u8[1024]{0}', space=vmem, size = 0x400, scoped, tag = 'output window, operand 0']
    %37 = vsyncpa [#allocation7], 0
    %s38 = scalar_lea.sflag [#allocation7], 1
    %39 = vsyncpa %s38, 0
    %40 = vsyncpa [#allocation10], 0
    %s41 = scalar_lea.sflag [#allocation10], 1
    %42 = vsyncpa %s41, 0
    %43 = vsyncpa [#allocation13], 0
    %s44 = scalar_lea.sflag [#allocation13], 1
    %45 = vsyncpa %s44, 0
    %46 = vsyncpa [#allocation16], 0
    %s47 = scalar_lea.sflag [#allocation16], 1
    %48 = vsyncpa %s47, 0
    %49 = vsyncpa [#allocation19], 0
    %50 = vsyncpa [#allocation8], 0
    %s51 = scalar_lea.sflag [#allocation8], 1
    %52 = vsyncpa %s51, 0
    loop: start=0, step=1, limit=4
    $region2: #{tpu_custom_call.1} parent=1 // loop_pre_header
      _
    $region3: #{tpu_custom_call.1} parent=1 // loop_header
      %s54 = sphi 0, %s58
      %p55 = scmp.ge.s32.totalorder %s54, 4
      %s64 = sphi 0, %s66
      %s67 = sphi 0, %s64
      %s68 = sphi 0, %s67
      %s84 = sphi 0, %s68
      %s92 = sphi 0, %s94
      %s95 = sphi 0, %s92
      %s96 = sphi 0, %s95
      %s112 = sphi 0, %s96
      %s122 = sphi 0, %s124
      %s125 = sphi 0, %s122
      %s126 = sphi 0, %s125
      %s142 = sphi 0, %s126
      %s154 = sphi 0, %s156
      %s157 = sphi 0, %s154
      %s158 = sphi 0, %s157
      %s174 = sphi 0, %s158
      %s186 = sphi 0, %s188
      %s189 = sphi 0, %s186
      %s190 = sphi 0, %s189
      %s206 = sphi 0, %s190
      %s218 = sphi 0, %s220
      %s221 = sphi 0, %s218
      %s222 = sphi 0, %s221
      %s238 = sphi 0, %s222
      %s250 = sphi 0, %s252
      %s253 = sphi 0, %s250
      %s254 = sphi 0, %s253
      %s270 = sphi 0, %s254
      %s274 = sphi 0, %s274
      %s276 = sphi 0, %s274
      %s277 = sphi 0, %s276
      %s291 = sphi 0, %s277
      %s295 = sphi 0, %s295
      %s297 = sphi 0, %s295
      %s298 = sphi 0, %s297
      %s312 = sphi 0, %s298
      %s316 = sphi 0, %s316
      %s318 = sphi 0, %s316
      %s319 = sphi 0, %s318
      %s333 = sphi 0, %s319
      %s337 = sphi 0, %s337
      %s339 = sphi 0, %s337
      %s340 = sphi 0, %s339
      %s354 = sphi 0, %s340
      %s358 = sphi 0, %s358
      %s360 = sphi 0, %s358
      %s361 = sphi 0, %s360
      %s375 = sphi 0, %s361
      %s379 = sphi 0, %s379
      %s381 = sphi 0, %s379
      %s382 = sphi 0, %s381
      %s396 = sphi 0, %s382
      %s402 = sphi 0, %s404
      %s405 = sphi 0, %s402
      %s406 = sphi 0, %s405
      %s422 = sphi 0, %s406
      %s428 = sphi 0, %s430
      %s431 = sphi 0, %s428
      %s432 = sphi 0, %s431
      %s448 = sphi 0, %s432
    $region4: #{tpu_custom_call.1} parent=1 // loop_header_branch
      %57 = sbr.rel (%p55) target = $region8
    $region5: #{tpu_custom_call.1} parent=1 // loop_body
      %s59 = ssub.s32 %s54, 1
      %s60 = ssub.s32 %s54, 2
      %s61 = sadd.s32 %s54, 1
      %s62 = ssub.s32 %s54, %s61
      %p63 = scmp.eq.s32.totalorder %s62, 0
      %s65 = sadd.s32 %s64, 1
      %s66 = scalar_select %p63, %s64, %s65
      %p69 = pneg %p63
      %p70 = scmp.eq.s32.totalorder %s54, 1
      %p71 = por %p69, %p70
      %p72 = scmp.ne.s32.totalorder %s64, %s67
      %p73 = scmp.eq.s32.totalorder %s54, 0
      %p74 = por %p72, %p73
      %p75 = scmp.ne.s32.totalorder %s64, %s67
      %p76 = scmp.eq.s32.totalorder %s59, 1
      %p77 = por %p75, %p76
      %p78 = scmp.ne.s32.totalorder %s67, %s68
      %p79 = scmp.eq.s32.totalorder %s59, 0
      %p80 = por %p78, %p79
      %p81 = scmp.ne.s32.totalorder %s67, %s68
      %p82 = scmp.eq.s32.totalorder %s60, 1
      %p83 = por %p81, %p82
      %p85 = scmp.ne.s32.totalorder %s68, %s84
      %p86 = scmp.eq.s32.totalorder %s60, 0
      %p87 = por %p85, %p86
      %s88 = sld [smem:[#allocation3 + %s54]]
      %s89 = sld [smem:[#allocation3 + %s61]]
      %s90 = ssub.s32 %s88, %s89
      %p91 = scmp.eq.s32.totalorder %s90, 0
      %s93 = sadd.s32 %s92, 1
      %s94 = scalar_select %p91, %s92, %s93
      %p97 = pneg %p91
      %p98 = scmp.eq.s32.totalorder %s54, 1
      %p99 = por %p97, %p98
      %p100 = scmp.ne.s32.totalorder %s92, %s95
      %p101 = scmp.eq.s32.totalorder %s54, 0
      %p102 = por %p100, %p101
      %p103 = scmp.ne.s32.totalorder %s92, %s95
      %p104 = scmp.eq.s32.totalorder %s59, 1
      %p105 = por %p103, %p104
      %p106 = scmp.ne.s32.totalorder %s95, %s96
      %p107 = scmp.eq.s32.totalorder %s59, 0
      %p108 = por %p106, %p107
      %p109 = scmp.ne.s32.totalorder %s95, %s96
      %p110 = scmp.eq.s32.totalorder %s60, 1
      %p111 = por %p109, %p110
      %p113 = scmp.ne.s32.totalorder %s96, %s112
      %p114 = scmp.eq.s32.totalorder %s60, 0
      %p115 = por %p113, %p114
      %s116 = smul.u32 %s54, 128
      %s117 = sld [smem:[#allocation4 + %s116]]
      %s118 = smul.u32 %s61, 128
      %s119 = sld [smem:[#allocation4 + %s118]]
      %s120 = ssub.s32 %s117, %s119
      %p121 = scmp.eq.s32.totalorder %s120, 0
      %s123 = sadd.s32 %s122, 1
      %s124 = scalar_select %p121, %s122, %s123
      %p127 = pneg %p121
      %p128 = scmp.eq.s32.totalorder %s54, 1
      %p129 = por %p127, %p128
      %p130 = scmp.ne.s32.totalorder %s122, %s125
      %p131 = scmp.eq.s32.totalorder %s54, 0
      %p132 = por %p130, %p131
      %p133 = scmp.ne.s32.totalorder %s122, %s125
      %p134 = scmp.eq.s32.totalorder %s59, 1
      %p135 = por %p133, %p134
      %p136 = scmp.ne.s32.totalorder %s125, %s126
      %p137 = scmp.eq.s32.totalorder %s59, 0
      %p138 = por %p136, %p137
      %p139 = scmp.ne.s32.totalorder %s125, %s126
      %p140 = scmp.eq.s32.totalorder %s60, 1
      %p141 = por %p139, %p140
      %p143 = scmp.ne.s32.totalorder %s126, %s142
      %p144 = scmp.eq.s32.totalorder %s60, 0
      %p145 = por %p143, %p144
      %s146 = smul.u32 %s54, 128
      %s147 = sadd.s32 %s146, 1
      %s148 = sld [smem:[#allocation4 + %s147]]
      %s149 = smul.u32 %s61, 128
      %s150 = sadd.s32 %s149, 1
      %s151 = sld [smem:[#allocation4 + %s150]]
      %s152 = ssub.s32 %s148, %s151
      %p153 = scmp.eq.s32.totalorder %s152, 0
      %s155 = sadd.s32 %s154, 1
      %s156 = scalar_select %p153, %s154, %s155
      %p159 = pneg %p153
      %p160 = scmp.eq.s32.totalorder %s54, 1
      %p161 = por %p159, %p160
      %p162 = scmp.ne.s32.totalorder %s154, %s157
      %p163 = scmp.eq.s32.totalorder %s54, 0
      %p164 = por %p162, %p163
      %p165 = scmp.ne.s32.totalorder %s154, %s157
      %p166 = scmp.eq.s32.totalorder %s59, 1
      %p167 = por %p165, %p166
      %p168 = scmp.ne.s32.totalorder %s157, %s158
      %p169 = scmp.eq.s32.totalorder %s59, 0
      %p170 = por %p168, %p169
      %p171 = scmp.ne.s32.totalorder %s157, %s158
      %p172 = scmp.eq.s32.totalorder %s60, 1
      %p173 = por %p171, %p172
      %p175 = scmp.ne.s32.totalorder %s158, %s174
      %p176 = scmp.eq.s32.totalorder %s60, 0
      %p177 = por %p175, %p176
      %s178 = smul.u32 %s54, 128
      %s179 = sadd.s32 %s178, 2
      %s180 = sld [smem:[#allocation4 + %s179]]
      %s181 = smul.u32 %s61, 128
      %s182 = sadd.s32 %s181, 2
      %s183 = sld [smem:[#allocation4 + %s182]]
      %s184 = ssub.s32 %s180, %s183
      %p185 = scmp.eq.s32.totalorder %s184, 0
      %s187 = sadd.s32 %s186, 1
      %s188 = scalar_select %p185, %s186, %s187
      %p191 = pneg %p185
      %p192 = scmp.eq.s32.totalorder %s54, 1
      %p193 = por %p191, %p192
      %p194 = scmp.ne.s32.totalorder %s186, %s189
      %p195 = scmp.eq.s32.totalorder %s54, 0
      %p196 = por %p194, %p195
      %p197 = scmp.ne.s32.totalorder %s186, %s189
      %p198 = scmp.eq.s32.totalorder %s59, 1
      %p199 = por %p197, %p198
      %p200 = scmp.ne.s32.totalorder %s189, %s190
      %p201 = scmp.eq.s32.totalorder %s59, 0
      %p202 = por %p200, %p201
      %p203 = scmp.ne.s32.totalorder %s189, %s190
      %p204 = scmp.eq.s32.totalorder %s60, 1
      %p205 = por %p203, %p204
      %p207 = scmp.ne.s32.totalorder %s190, %s206
      %p208 = scmp.eq.s32.totalorder %s60, 0
      %p209 = por %p207, %p208
      %s210 = smul.u32 %s54, 128
      %s211 = sadd.s32 %s210, 3
      %s212 = sld [smem:[#allocation4 + %s211]]
      %s213 = smul.u32 %s61, 128
      %s214 = sadd.s32 %s213, 3
      %s215 = sld [smem:[#allocation4 + %s214]]
      %s216 = ssub.s32 %s212, %s215
      %p217 = scmp.eq.s32.totalorder %s216, 0
      %s219 = sadd.s32 %s218, 1
      %s220 = scalar_select %p217, %s218, %s219
      %p223 = pneg %p217
      %p224 = scmp.eq.s32.totalorder %s54, 1
      %p225 = por %p223, %p224
      %p226 = scmp.ne.s32.totalorder %s218, %s221
      %p227 = scmp.eq.s32.totalorder %s54, 0
      %p228 = por %p226, %p227
      %p229 = scmp.ne.s32.totalorder %s218, %s221
      %p230 = scmp.eq.s32.totalorder %s59, 1
      %p231 = por %p229, %p230
      %p232 = scmp.ne.s32.totalorder %s221, %s222
      %p233 = scmp.eq.s32.totalorder %s59, 0
      %p234 = por %p232, %p233
      %p235 = scmp.ne.s32.totalorder %s221, %s222
      %p236 = scmp.eq.s32.totalorder %s60, 1
      %p237 = por %p235, %p236
      %p239 = scmp.ne.s32.totalorder %s222, %s238
      %p240 = scmp.eq.s32.totalorder %s60, 0
      %p241 = por %p239, %p240
      %s242 = smul.u32 %s54, 128
      %s243 = sadd.s32 %s242, 4
      %s244 = sld [smem:[#allocation4 + %s243]]
      %s245 = smul.u32 %s61, 128
      %s246 = sadd.s32 %s245, 4
      %s247 = sld [smem:[#allocation4 + %s246]]
      %s248 = ssub.s32 %s244, %s247
      %p249 = scmp.eq.s32.totalorder %s248, 0
      %s251 = sadd.s32 %s250, 1
      %s252 = scalar_select %p249, %s250, %s251
      %p255 = pneg %p249
      %p256 = scmp.eq.s32.totalorder %s54, 1
      %p257 = por %p255, %p256
      %p258 = scmp.ne.s32.totalorder %s250, %s253
      %p259 = scmp.eq.s32.totalorder %s54, 0
      %p260 = por %p258, %p259
      %p261 = scmp.ne.s32.totalorder %s250, %s253
      %p262 = scmp.eq.s32.totalorder %s59, 1
      %p263 = por %p261, %p262
      %p264 = scmp.ne.s32.totalorder %s253, %s254
      %p265 = scmp.eq.s32.totalorder %s59, 0
      %p266 = por %p264, %p265
      %p267 = scmp.ne.s32.totalorder %s253, %s254
      %p268 = scmp.eq.s32.totalorder %s60, 1
      %p269 = por %p267, %p268
      %p271 = scmp.ne.s32.totalorder %s254, %s270
      %p272 = scmp.eq.s32.totalorder %s60, 0
      %p273 = por %p271, %p272
      %s275 = sadd.s32 %s274, 1
      %p278 = scmp.eq.s32.totalorder %s54, 1
      %p279 = scmp.ne.s32.totalorder %s274, %s276
      %p280 = scmp.eq.s32.totalorder %s54, 0
      %p281 = por %p279, %p280
      %p282 = scmp.ne.s32.totalorder %s274, %s276
      %p283 = scmp.eq.s32.totalorder %s59, 1
      %p284 = por %p282, %p283
      %p285 = scmp.ne.s32.totalorder %s276, %s277
      %p286 = scmp.eq.s32.totalorder %s59, 0
      %p287 = por %p285, %p286
      %p288 = scmp.ne.s32.totalorder %s276, %s277
      %p289 = scmp.eq.s32.totalorder %s60, 1
      %p290 = por %p288, %p289
      %p292 = scmp.ne.s32.totalorder %s277, %s291
      %p293 = scmp.eq.s32.totalorder %s60, 0
      %p294 = por %p292, %p293
      %s296 = sadd.s32 %s295, 1
      %p299 = scmp.eq.s32.totalorder %s54, 1
      %p300 = scmp.ne.s32.totalorder %s295, %s297
      %p301 = scmp.eq.s32.totalorder %s54, 0
      %p302 = por %p300, %p301
      %p303 = scmp.ne.s32.totalorder %s295, %s297
      %p304 = scmp.eq.s32.totalorder %s59, 1
      %p305 = por %p303, %p304
      %p306 = scmp.ne.s32.totalorder %s297, %s298
      %p307 = scmp.eq.s32.totalorder %s59, 0
      %p308 = por %p306, %p307
      %p309 = scmp.ne.s32.totalorder %s297, %s298
      %p310 = scmp.eq.s32.totalorder %s60, 1
      %p311 = por %p309, %p310
      %p313 = scmp.ne.s32.totalorder %s298, %s312
      %p314 = scmp.eq.s32.totalorder %s60, 0
      %p315 = por %p313, %p314
      %s317 = sadd.s32 %s316, 1
      %p320 = scmp.eq.s32.totalorder %s54, 1
      %p321 = scmp.ne.s32.totalorder %s316, %s318
      %p322 = scmp.eq.s32.totalorder %s54, 0
      %p323 = por %p321, %p322
      %p324 = scmp.ne.s32.totalorder %s316, %s318
      %p325 = scmp.eq.s32.totalorder %s59, 1
      %p326 = por %p324, %p325
      %p327 = scmp.ne.s32.totalorder %s318, %s319
      %p328 = scmp.eq.s32.totalorder %s59, 0
      %p329 = por %p327, %p328
      %p330 = scmp.ne.s32.totalorder %s318, %s319
      %p331 = scmp.eq.s32.totalorder %s60, 1
      %p332 = por %p330, %p331
      %p334 = scmp.ne.s32.totalorder %s319, %s333
      %p335 = scmp.eq.s32.totalorder %s60, 0
      %p336 = por %p334, %p335
      %s338 = sadd.s32 %s337, 1
      %p341 = scmp.eq.s32.totalorder %s54, 1
      %p342 = scmp.ne.s32.totalorder %s337, %s339
      %p343 = scmp.eq.s32.totalorder %s54, 0
      %p344 = por %p342, %p343
      %p345 = scmp.ne.s32.totalorder %s337, %s339
      %p346 = scmp.eq.s32.totalorder %s59, 1
      %p347 = por %p345, %p346
      %p348 = scmp.ne.s32.totalorder %s339, %s340
      %p349 = scmp.eq.s32.totalorder %s59, 0
      %p350 = por %p348, %p349
      %p351 = scmp.ne.s32.totalorder %s339, %s340
      %p352 = scmp.eq.s32.totalorder %s60, 1
      %p353 = por %p351, %p352
      %p355 = scmp.ne.s32.totalorder %s340, %s354
      %p356 = scmp.eq.s32.totalorder %s60, 0
      %p357 = por %p355, %p356
      %s359 = sadd.s32 %s358, 1
      %p362 = scmp.eq.s32.totalorder %s54, 1
      %p363 = scmp.ne.s32.totalorder %s358, %s360
      %p364 = scmp.eq.s32.totalorder %s54, 0
      %p365 = por %p363, %p364
      %p366 = scmp.ne.s32.totalorder %s358, %s360
      %p367 = scmp.eq.s32.totalorder %s59, 1
      %p368 = por %p366, %p367
      %p369 = scmp.ne.s32.totalorder %s360, %s361
      %p370 = scmp.eq.s32.totalorder %s59, 0
      %p371 = por %p369, %p370
      %p372 = scmp.ne.s32.totalorder %s360, %s361
      %p373 = scmp.eq.s32.totalorder %s60, 1
      %p374 = por %p372, %p373
      %p376 = scmp.ne.s32.totalorder %s361, %s375
      %p377 = scmp.eq.s32.totalorder %s60, 0
      %p378 = por %p376, %p377
      %s380 = sadd.s32 %s379, 1
      %p383 = scmp.eq.s32.totalorder %s54, 1
      %p384 = scmp.ne.s32.totalorder %s379, %s381
      %p385 = scmp.eq.s32.totalorder %s54, 0
      %p386 = por %p384, %p385
      %p387 = scmp.ne.s32.totalorder %s379, %s381
      %p388 = scmp.eq.s32.totalorder %s59, 1
      %p389 = por %p387, %p388
      %p390 = scmp.ne.s32.totalorder %s381, %s382
      %p391 = scmp.eq.s32.totalorder %s59, 0
      %p392 = por %p390, %p391
      %p393 = scmp.ne.s32.totalorder %s381, %s382
      %p394 = scmp.eq.s32.totalorder %s60, 1
      %p395 = por %p393, %p394
      %p397 = scmp.ne.s32.totalorder %s382, %s396
      %p398 = scmp.eq.s32.totalorder %s60, 0
      %p399 = por %p397, %p398
      %s400 = ssub.s32 %s54, %s61
      %p401 = scmp.eq.s32.totalorder %s400, 0
      %s403 = sadd.s32 %s402, 1
      %s404 = scalar_select %p401, %s402, %s403
      %p407 = pneg %p401
      %p408 = scmp.eq.s32.totalorder %s54, 1
      %p409 = por %p407, %p408
      %p410 = scmp.ne.s32.totalorder %s402, %s405
      %p411 = scmp.eq.s32.totalorder %s54, 0
      %p412 = por %p410, %p411
      %p413 = scmp.ne.s32.totalorder %s402, %s405
      %p414 = scmp.eq.s32.totalorder %s59, 1
      %p415 = por %p413, %p414
      %p416 = scmp.ne.s32.totalorder %s405, %s406
      %p417 = scmp.eq.s32.totalorder %s59, 0
      %p418 = por %p416, %p417
      %p419 = scmp.ne.s32.totalorder %s405, %s406
      %p420 = scmp.eq.s32.totalorder %s60, 1
      %p421 = por %p419, %p420
      %p423 = scmp.ne.s32.totalorder %s406, %s422
      %p424 = scmp.eq.s32.totalorder %s60, 0
      %p425 = por %p423, %p424
      %s426 = ssub.s32 %s54, %s61
      %p427 = scmp.eq.s32.totalorder %s426, 0
      %s429 = sadd.s32 %s428, 1
      %s430 = scalar_select %p427, %s428, %s429
      %p433 = pneg %p427
      %p434 = scmp.eq.s32.totalorder %s54, 1
      %p435 = por %p433, %p434
      %p436 = scmp.ne.s32.totalorder %s428, %s431
      %p437 = scmp.eq.s32.totalorder %s54, 0
      %p438 = por %p436, %p437
      %p439 = scmp.ne.s32.totalorder %s428, %s431
      %p440 = scmp.eq.s32.totalorder %s59, 1
      %p441 = por %p439, %p440
      %p442 = scmp.ne.s32.totalorder %s431, %s432
      %p443 = scmp.eq.s32.totalorder %s59, 0
      %p444 = por %p442, %p443
      %p445 = scmp.ne.s32.totalorder %s431, %s432
      %p446 = scmp.eq.s32.totalorder %s60, 1
      %p447 = por %p445, %p446
      %p449 = scmp.ne.s32.totalorder %s432, %s448
      %p450 = scmp.eq.s32.totalorder %s60, 0
      %p451 = por %p449, %p450
      %p452 = scmp.le.s32.totalorder 1, %s54
      %p453 = scmp.lt.s32.totalorder %s54, 3
      %p454 = pnand %p452, %p453
      %p455 = pneg %p454
      // Predicated region
      $region9: #{tpu_custom_call.1} parent=5 // pred_check
        _
      $region10: #{tpu_custom_call.1} parent=5 // pred_check_branch
        %457 = sbr.rel (%p454) target = $region12
      $region11: #{tpu_custom_call.1} parent=5 // pred_region
        %s458 = ssub.s32 %s54, 1
        // Predicated region
        $region13: #{tpu_custom_call.1} parent=11 // pred_check
          %p459 = pneg %p287
        $region14: #{tpu_custom_call.1} parent=11 // pred_check_branch
          %461 = sbr.rel (%p459) target = $region16
        $region15: #{tpu_custom_call.1} parent=11 // pred_region
          _
        $region16: #{tpu_custom_call.1} parent=11 // pred_fallthru
          _
        // Predicated region
        $region17: #{tpu_custom_call.1} parent=11 // pred_check
          %p462 = pneg %p308
        $region18: #{tpu_custom_call.1} parent=11 // pred_check_branch
          %464 = sbr.rel (%p462) target = $region20
        $region19: #{tpu_custom_call.1} parent=11 // pred_region
          %466 = vsyncadd [#allocation19], 0
          %s467 = sshll.u32 %s10, 4
          %s468 = int_to_ptr.hbm [resolvable:$true] %s467
          %s469 = sshll.u32 [#allocation18], 4
          %s470 = int_to_ptr.vmem [resolvable:$true] %s469
          %475 = dma.hbm_to_vmem [thread:$0]  %s468, 1024, %s470, [#allocation19], 64, 64, 4
        $region20: #{tpu_custom_call.1} parent=11 // pred_fallthru
          _
        // Predicated region
        $region21: #{tpu_custom_call.1} parent=11 // pred_check
          %p476 = pneg %p329
        $region22: #{tpu_custom_call.1} parent=11 // pred_check_branch
          %478 = sbr.rel (%p476) target = $region24
        $region23: #{tpu_custom_call.1} parent=11 // pred_region
          _
        $region24: #{tpu_custom_call.1} parent=11 // pred_fallthru
          _
        // Predicated region
        $region25: #{tpu_custom_call.1} parent=11 // pred_check
          %p479 = pneg %p350
        $region26: #{tpu_custom_call.1} parent=11 // pred_check_branch
          %481 = sbr.rel (%p479) target = $region28
        $region27: #{tpu_custom_call.1} parent=11 // pred_region
          %483 = vsyncadd [#allocation19], 0
          %s484 = sshll.u32 %s12, 4
          %s485 = int_to_ptr.hbm [resolvable:$true] %s484
          %s486 = sshll.u32 [#allocation20], 4
          %s487 = int_to_ptr.vmem [resolvable:$true] %s486
          %492 = dma.hbm_to_vmem [thread:$0]  %s485, 1024, %s487, [#allocation19], 64, 64, 4
        $region28: #{tpu_custom_call.1} parent=11 // pred_fallthru
          _
        // Predicated region
        $region29: #{tpu_custom_call.1} parent=11 // pred_check
          %p493 = pneg %p371
        $region30: #{tpu_custom_call.1} parent=11 // pred_check_branch
          %495 = sbr.rel (%p493) target = $region32
        $region31: #{tpu_custom_call.1} parent=11 // pred_region
          _
        $region32: #{tpu_custom_call.1} parent=11 // pred_fallthru
          _
        // Predicated region
        $region33: #{tpu_custom_call.1} parent=11 // pred_check
          %p496 = pneg %p392
        $region34: #{tpu_custom_call.1} parent=11 // pred_check_branch
          %498 = sbr.rel (%p496) target = $region36
        $region35: #{tpu_custom_call.1} parent=11 // pred_region
          _
        $region36: #{tpu_custom_call.1} parent=11 // pred_fallthru
          _
      $region12: #{tpu_custom_call.1} parent=5 // pred_fallthru
        _
      %p499 = scmp.lt.s32.totalorder %s54, 2
      // Predicated region
      $region37: #{tpu_custom_call.1} parent=5 // pred_check
        %p500 = pneg %p499
      $region38: #{tpu_custom_call.1} parent=5 // pred_check_branch
        %502 = sbr.rel (%p500) target = $region40
      $region39: #{tpu_custom_call.1} parent=5 // pred_region
        // Predicated region
        $region41: #{tpu_custom_call.1} parent=39 // pred_check
          %p503 = pneg %p74
        $region42: #{tpu_custom_call.1} parent=39 // pred_check_branch
          %505 = sbr.rel (%p503) target = $region44
        $region43: #{tpu_custom_call.1} parent=39 // pred_region
          %s506 = sand.u32 %s64, 1
          %s507 = scalar_lea.sflag [#allocation7], %s506
          %s508 = sand.u32 %s64, 1
          %s509 = smul.addr %s508, 4
          %s510 = scalar_lea.vmem [#allocation6], %s509
          %512 = vsyncadd %s507, 0
          %s513 = smul.addr %s54, 4
          %s514 = scalar_lea.hbm %s2, %s513
          %s516 = sshll.u32 %s514, 4
          %s517 = int_to_ptr.hbm [resolvable:$true] %s516
          %s518 = sshll.u32 %s510, 4
          %s519 = int_to_ptr.vmem [resolvable:$true] %s518
          %521 = dma.hbm_to_vmem [thread:$0]  %s517, 64, %s519, %s507
        $region44: #{tpu_custom_call.1} parent=39 // pred_fallthru
          _
        // Predicated region
        $region45: #{tpu_custom_call.1} parent=39 // pred_check
          %p522 = pneg %p102
        $region46: #{tpu_custom_call.1} parent=39 // pred_check_branch
          %524 = sbr.rel (%p522) target = $region48
        $region47: #{tpu_custom_call.1} parent=39 // pred_region
          %s525 = sand.u32 %s54, 1
          %s526 = scalar_lea.sflag [#allocation10], %s525
          %s527 = sand.u32 %s92, 1
          %s528 = scalar_lea.vmem [#allocation9], %s527
          %s529 = sld [smem:[#allocation3 + %s54]]
          %531 = vsyncadd %s526, 0
          %s532 = scalar_lea.hbm %s3, %s529
          %s534 = sshll.u32 %s532, 4
          %s535 = int_to_ptr.hbm [resolvable:$true] %s534
          %s536 = sshll.u32 %s528, 4
          %s537 = int_to_ptr.vmem [resolvable:$true] %s536
          %539 = dma.hbm_to_vmem [thread:$0]  %s535, 16, %s537, %s526
        $region48: #{tpu_custom_call.1} parent=39 // pred_fallthru
          _
        // Predicated region
        $region49: #{tpu_custom_call.1} parent=39 // pred_check
          %p540 = pneg %p132
        $region50: #{tpu_custom_call.1} parent=39 // pred_check_branch
          %542 = sbr.rel (%p540) target = $region52
        $region51: #{tpu_custom_call.1} parent=39 // pred_region
          %s543 = sand.u32 %s54, 1
          %s544 = scalar_lea.sflag [#allocation10], %s543
          %s545 = sand.u32 %s122, 1
          %s546 = scalar_lea.vmem [#allocation11], %s545
          %s547 = smul.u32 %s54, 128
          %s548 = sld [smem:[#allocation4 + %s547]]
          %550 = vsyncadd %s544, 0
          %s551 = scalar_lea.hbm %s4, %s548
          %s553 = sshll.u32 %s551, 4
          %s554 = int_to_ptr.hbm [resolvable:$true] %s553
          %s555 = sshll.u32 %s546, 4
          %s556 = int_to_ptr.vmem [resolvable:$true] %s555
          %558 = dma.hbm_to_vmem [thread:$0]  %s554, 16, %s556, %s544
        $region52: #{tpu_custom_call.1} parent=39 // pred_fallthru
          _
        // Predicated region
        $region53: #{tpu_custom_call.1} parent=39 // pred_check
          %p559 = pneg %p164
        $region54: #{tpu_custom_call.1} parent=39 // pred_check_branch
          %561 = sbr.rel (%p559) target = $region56
        $region55: #{tpu_custom_call.1} parent=39 // pred_region
          %s562 = sand.u32 %s54, 1
          %s563 = scalar_lea.sflag [#allocation13], %s562
          %s564 = sand.u32 %s154, 1
          %s565 = scalar_lea.vmem [#allocation12], %s564
          %s566 = smul.u32 %s54, 128
          %s567 = sadd.s32 %s566, 1
          %s568 = sld [smem:[#allocation4 + %s567]]
          %570 = vsyncadd %s563, 0
          %s571 = scalar_lea.hbm %s5, %s568
          %s573 = sshll.u32 %s571, 4
          %s574 = int_to_ptr.hbm [resolvable:$true] %s573
          %s575 = sshll.u32 %s565, 4
          %s576 = int_to_ptr.vmem [resolvable:$true] %s575
          %578 = dma.hbm_to_vmem [thread:$0]  %s574, 16, %s576, %s563
        $region56: #{tpu_custom_call.1} parent=39 // pred_fallthru
          _
        // Predicated region
        $region57: #{tpu_custom_call.1} parent=39 // pred_check
          %p579 = pneg %p196
        $region58: #{tpu_custom_call.1} parent=39 // pred_check_branch
          %581 = sbr.rel (%p579) target = $region60
        $region59: #{tpu_custom_call.1} parent=39 // pred_region
          %s582 = sand.u32 %s54, 1
          %s583 = scalar_lea.sflag [#allocation13], %s582
          %s584 = sand.u32 %s186, 1
          %s585 = scalar_lea.vmem [#allocation14], %s584
          %s586 = smul.u32 %s54, 128
          %s587 = sadd.s32 %s586, 2
          %s588 = sld [smem:[#allocation4 + %s587]]
          %590 = vsyncadd %s583, 0
          %s591 = scalar_lea.hbm %s6, %s588
          %s593 = sshll.u32 %s591, 4
          %s594 = int_to_ptr.hbm [resolvable:$true] %s593
          %s595 = sshll.u32 %s585, 4
          %s596 = int_to_ptr.vmem [resolvable:$true] %s595
          %598 = dma.hbm_to_vmem [thread:$0]  %s594, 16, %s596, %s583
        $region60: #{tpu_custom_call.1} parent=39 // pred_fallthru
          _
        // Predicated region
        $region61: #{tpu_custom_call.1} parent=39 // pred_check
          %p599 = pneg %p228
        $region62: #{tpu_custom_call.1} parent=39 // pred_check_branch
          %601 = sbr.rel (%p599) target = $region64
        $region63: #{tpu_custom_call.1} parent=39 // pred_region
          %s602 = sand.u32 %s54, 1
          %s603 = scalar_lea.sflag [#allocation16], %s602
          %s604 = sand.u32 %s218, 1
          %s605 = scalar_lea.vmem [#allocation15], %s604
          %s606 = smul.u32 %s54, 128
          %s607 = sadd.s32 %s606, 3
          %s608 = sld [smem:[#allocation4 + %s607]]
          %610 = vsyncadd %s603, 0
          %s611 = scalar_lea.hbm %s7, %s608
          %s613 = sshll.u32 %s611, 4
          %s614 = int_to_ptr.hbm [resolvable:$true] %s613
          %s615 = sshll.u32 %s605, 4
          %s616 = int_to_ptr.vmem [resolvable:$true] %s615
          %618 = dma.hbm_to_vmem [thread:$0]  %s614, 16, %s616, %s603
        $region64: #{tpu_custom_call.1} parent=39 // pred_fallthru
          _
        // Predicated region
        $region65: #{tpu_custom_call.1} parent=39 // pred_check
          %p619 = pneg %p260
        $region66: #{tpu_custom_call.1} parent=39 // pred_check_branch
          %621 = sbr.rel (%p619) target = $region68
        $region67: #{tpu_custom_call.1} parent=39 // pred_region
          %s622 = sand.u32 %s54, 1
          %s623 = scalar_lea.sflag [#allocation16], %s622
          %s624 = sand.u32 %s250, 1
          %s625 = scalar_lea.vmem [#allocation17], %s624
          %s626 = smul.u32 %s54, 128
          %s627 = sadd.s32 %s626, 4
          %s628 = sld [smem:[#allocation4 + %s627]]
          %630 = vsyncadd %s623, 0
          %s631 = scalar_lea.hbm %s8, %s628
          %s633 = sshll.u32 %s631, 4
          %s634 = int_to_ptr.hbm [resolvable:$true] %s633
          %s635 = sshll.u32 %s625, 4
          %s636 = int_to_ptr.vmem [resolvable:$true] %s635
          %638 = dma.hbm_to_vmem [thread:$0]  %s634, 16, %s636, %s623
        $region68: #{tpu_custom_call.1} parent=39 // pred_fallthru
          _
      $region40: #{tpu_custom_call.1} parent=5 // pred_fallthru
        _
      %p639 = scmp.le.s32.totalorder 1, %s54
      %p640 = scmp.lt.s32.totalorder %s54, 3
      %p641 = pnand %p639, %p640
      %p642 = pneg %p641
      // Predicated region
      $region69: #{tpu_custom_call.1} parent=5 // pred_check
        _
      $region70: #{tpu_custom_call.1} parent=5 // pred_check_branch
        %644 = sbr.rel (%p641) target = $region72
      $region71: #{tpu_custom_call.1} parent=5 // pred_region
        %s645 = ssub.s32 %s54, 1
        %s646 = sand.u32 %s67, 1
        %s647 = scalar_lea.sflag [#allocation7], %s646
        %s648 = sand.u32 %s67, 1
        %s649 = smul.addr %s648, 4
        %s650 = scalar_lea.vmem [#allocation6], %s649
        // Predicated region
        $region73: #{tpu_custom_call.1} parent=71 // pred_check
          %p651 = pneg %p80
        $region74: #{tpu_custom_call.1} parent=71 // pred_check_branch
          %653 = sbr.rel (%p651) target = $region76
        $region75: #{tpu_custom_call.1} parent=71 // pred_region
          %655 = dma.done %s647, 64
        $region76: #{tpu_custom_call.1} parent=71 // pred_fallthru
          _
        %s656 = sand.u32 %s59, 1
        %s657 = scalar_lea.sflag [#allocation10], %s656
        %s658 = sand.u32 %s95, 1
        %s659 = scalar_lea.vmem [#allocation9], %s658
        // Predicated region
        $region77: #{tpu_custom_call.1} parent=71 // pred_check
          %p660 = pneg %p108
        $region78: #{tpu_custom_call.1} parent=71 // pred_check_branch
          %662 = sbr.rel (%p660) target = $region80
        $region79: #{tpu_custom_call.1} parent=71 // pred_region
          %664 = dma.done %s657, 16
        $region80: #{tpu_custom_call.1} parent=71 // pred_fallthru
          _
        %s665 = sand.u32 %s59, 1
        %s666 = scalar_lea.sflag [#allocation10], %s665
        %s667 = sand.u32 %s125, 1
        %s668 = scalar_lea.vmem [#allocation11], %s667
        // Predicated region
        $region81: #{tpu_custom_call.1} parent=71 // pred_check
          %p669 = pneg %p138
        $region82: #{tpu_custom_call.1} parent=71 // pred_check_branch
          %671 = sbr.rel (%p669) target = $region84
        $region83: #{tpu_custom_call.1} parent=71 // pred_region
          %673 = dma.done %s666, 16
        $region84: #{tpu_custom_call.1} parent=71 // pred_fallthru
          _
        %s674 = sand.u32 %s59, 1
        %s675 = scalar_lea.sflag [#allocation13], %s674
        %s676 = sand.u32 %s157, 1
        %s677 = scalar_lea.vmem [#allocation12], %s676
        // Predicated region
        $region85: #{tpu_custom_call.1} parent=71 // pred_check
          %p678 = pneg %p170
        $region86: #{tpu_custom_call.1} parent=71 // pred_check_branch
          %680 = sbr.rel (%p678) target = $region88
        $region87: #{tpu_custom_call.1} parent=71 // pred_region
          %682 = dma.done %s675, 16
        $region88: #{tpu_custom_call.1} parent=71 // pred_fallthru
          _
        %s683 = sand.u32 %s59, 1
        %s684 = scalar_lea.sflag [#allocation13], %s683
        %s685 = sand.u32 %s189, 1
        %s686 = scalar_lea.vmem [#allocation14], %s685
        // Predicated region
        $region89: #{tpu_custom_call.1} parent=71 // pred_check
          %p687 = pneg %p202
        $region90: #{tpu_custom_call.1} parent=71 // pred_check_branch
          %689 = sbr.rel (%p687) target = $region92
        $region91: #{tpu_custom_call.1} parent=71 // pred_region
          %691 = dma.done %s684, 16
        $region92: #{tpu_custom_call.1} parent=71 // pred_fallthru
          _
        %s692 = sand.u32 %s59, 1
        %s693 = scalar_lea.sflag [#allocation16], %s692
        %s694 = sand.u32 %s221, 1
        %s695 = scalar_lea.vmem [#allocation15], %s694
        // Predicated region
        $region93: #{tpu_custom_call.1} parent=71 // pred_check
          %p696 = pneg %p234
        $region94: #{tpu_custom_call.1} parent=71 // pred_check_branch
          %698 = sbr.rel (%p696) target = $region96
        $region95: #{tpu_custom_call.1} parent=71 // pred_region
          %700 = dma.done %s693, 16
        $region96: #{tpu_custom_call.1} parent=71 // pred_fallthru
          _
        %s701 = sand.u32 %s59, 1
        %s702 = scalar_lea.sflag [#allocation16], %s701
        %s703 = sand.u32 %s253, 1
        %s704 = scalar_lea.vmem [#allocation17], %s703
        // Predicated region
        $region97: #{tpu_custom_call.1} parent=71 // pred_check
          %p705 = pneg %p266
        $region98: #{tpu_custom_call.1} parent=71 // pred_check_branch
          %707 = sbr.rel (%p705) target = $region100
        $region99: #{tpu_custom_call.1} parent=71 // pred_region
          %709 = dma.done %s702, 16
        $region100: #{tpu_custom_call.1} parent=71 // pred_fallthru
          _
        // Predicated region
        $region101: #{tpu_custom_call.1} parent=71 // pred_check
          %p710 = pneg %p308
        $region102: #{tpu_custom_call.1} parent=71 // pred_check_branch
          %712 = sbr.rel (%p710) target = $region104
        $region103: #{tpu_custom_call.1} parent=71 // pred_region
          %714 = dma.done [#allocation19], 1024
        $region104: #{tpu_custom_call.1} parent=71 // pred_fallthru
          _
        // Predicated region
        $region105: #{tpu_custom_call.1} parent=71 // pred_check
          %p715 = pneg %p350
        $region106: #{tpu_custom_call.1} parent=71 // pred_check_branch
          %717 = sbr.rel (%p715) target = $region108
        $region107: #{tpu_custom_call.1} parent=71 // pred_region
          %719 = dma.done [#allocation19], 1024
        $region108: #{tpu_custom_call.1} parent=71 // pred_fallthru
          _
        %s720 = sand.u32 %s67, 1
        %s721 = scalar_lea.sflag [#allocation7], %s720
        %s722 = sand.u32 %s67, 1
        %s723 = smul.addr %s722, 4
        %s724 = scalar_lea.vmem [#allocation6], %s723
        %p725 = pneg %p80
        %p726 = pneg %p77
        %s727 = sand.u32 %s59, 1
        %s728 = scalar_lea.sflag [#allocation10], %s727
        %s729 = sand.u32 %s95, 1
        %s730 = scalar_lea.vmem [#allocation9], %s729
        %p731 = pneg %p108
        %p732 = pneg %p105
        %s733 = sand.u32 %s59, 1
        %s734 = scalar_lea.sflag [#allocation10], %s733
        %s735 = sand.u32 %s125, 1
        %s736 = scalar_lea.vmem [#allocation11], %s735
        %p737 = pneg %p138
        %p738 = pneg %p135
        %s739 = sand.u32 %s59, 1
        %s740 = scalar_lea.sflag [#allocation13], %s739
        %s741 = sand.u32 %s157, 1
        %s742 = scalar_lea.vmem [#allocation12], %s741
        %p743 = pneg %p170
        %p744 = pneg %p167
        %s745 = sand.u32 %s59, 1
        %s746 = scalar_lea.sflag [#allocation13], %s745
        %s747 = sand.u32 %s189, 1
        %s748 = scalar_lea.vmem [#allocation14], %s747
        %p749 = pneg %p202
        %p750 = pneg %p199
        %s751 = sand.u32 %s59, 1
        %s752 = scalar_lea.sflag [#allocation16], %s751
        %s753 = sand.u32 %s221, 1
        %s754 = scalar_lea.vmem [#allocation15], %s753
        %p755 = pneg %p234
        %p756 = pneg %p231
        %s757 = sand.u32 %s59, 1
        %s758 = scalar_lea.sflag [#allocation16], %s757
        %s759 = sand.u32 %s253, 1
        %s760 = scalar_lea.vmem [#allocation17], %s759
        %p761 = pneg %p266
        %p762 = pneg %p263
        %p763 = pneg %p287
        %p764 = pneg %p284
        %p765 = pneg %p308
        %p766 = pneg %p305
        %p767 = pneg %p329
        %p768 = pneg %p326
        %p769 = pneg %p350
        %p770 = pneg %p347
        %p771 = pneg %p371
        %p772 = pneg %p368
        %p773 = pneg %p392
        %p774 = pneg %p389
        %p775 = pneg %p418
        %p776 = pneg %p415
        %s777 = sand.u32 %s405, 1
        %s778 = scalar_lea.sflag [#allocation8], %s777
        %s779 = sand.u32 %s405, 1
        %s780 = scalar_lea.vmem [#allocation21], %s779
        %p781 = pneg %p444
        %p782 = pneg %p441
        %p783 = scmp.lt.s32.totalorder %s59, 1
        %s784 = scalar_select %p783, %s59, 1
        %s785 = scalar_lea.vmem %s16, %s784
        %s786 = sld [smem:[#allocation3 + %s59]]
        %s787 = smul.u32 %s59, 128
        %s788 = sld [smem:[#allocation4 + %s787]]
        %s789 = smul.u32 %s59, 128
        %s790 = sadd.s32 %s789, 1
        %s791 = sld [smem:[#allocation4 + %s790]]
        %s792 = smul.u32 %s59, 128
        %s793 = sadd.s32 %s792, 2
        %s794 = sld [smem:[#allocation4 + %s793]]
        %s795 = smul.u32 %s59, 128
        %s796 = sadd.s32 %s795, 3
        %s797 = sld [smem:[#allocation4 + %s796]]
        %s798 = smul.u32 %s59, 128
        %s799 = sadd.s32 %s798, 4
        %s800 = sld [smem:[#allocation4 + %s799]]
        %p801 = scmp.lt.s32.totalorder %s59, 1
        %s802 = scalar_select %p801, %s59, 1
        %s803 = scalar_lea.vmem %s16, %s802
        %v804 = vld [vmem:[%s650] sm:$0xf]
        %v805 = vunpack.c.l.bf16 %v804
        %v806 = vld [vmem:[%s9] sm:$0x1]
        %v808 = vperm.slane %v806, 0
        %v810 = vmul.f32 %v805, %v808
        %811 = vadd.xlane.f32.xlu0 %v810
        %v812 = vpop.xlane.xlu0 %811
        %v813 = vld [vmem:[#allocation5] sm:$0x1]
        %v815 = vperm.slane %v813, 0
        %v817 = vadd.f32 %v812, %v815
        %v818 = vxor.u32 %v817, 2147483648
        %v819 = vmul.f32 %v818, 1.442695
        %v820 = vpow.pop %v819
        %v821 = vadd.f32 %v820, 1.0
        %v822 = vrcp.pop %v821
        %v823 = vmul.f32 %v821, %v822
        %v824 = vsub.f32 1.0, %v823
        %v825 = vmul.f32 %v822, %v824
        %v826 = vadd.f32 %v822, %v825
        %vm827 = vweird.f32 %v821
        %vm828 = vweird.f32 %v822
        %vm829 = vmor %vm827, %vm828
        %v830 = vsel %vm829, %v822, %v826
        %v831 = vand.u32 2147483647, %v821
        %vm832 = vcmp.eq.f32.partialorder %v831, 8.507059e+37
        %v833 = vand.u32 %v821, 2147483648
        %v834 = vor.u32 1.1754944e-38, %v833
        %v835 = vsel %vm832, %v834, %v830
        %v836 = vmul.f32 1.0, %v835
        %vm837 = vcmask 7168
        %v838 = vsel %vm837, %v836, 0.0
        %v839 = vrot.slane %v838, 4
        %v840 = vadd.f32 %v838, %v839
        %v841 = vrot.slane %v840, 2
        %v842 = vadd.f32 %v840, %v841
        %v843 = vrot.slane %v842, 1
        %v844 = vadd.f32 %v842, %v843
        %v845 = vrcp.pop %v844
        %v846 = vmul.f32 %v844, %v845
        %v847 = vsub.f32 1.0, %v846
        %v848 = vmul.f32 %v845, %v847
        %v849 = vadd.f32 %v845, %v848
        %vm850 = vweird.f32 %v844
        %vm851 = vweird.f32 %v845
        %vm852 = vmor %vm850, %vm851
        %v853 = vsel %vm852, %v845, %v849
        %v854 = vand.u32 2147483647, %v844
        %vm855 = vcmp.eq.f32.partialorder %v854, 8.507059e+37
        %v856 = vand.u32 %v844, 2147483648
        %v857 = vor.u32 1.1754944e-38, %v856
        %v858 = vsel %vm855, %v857, %v853
        %v859 = vmul.f32 %v836, %v858
        %861 = vset.pattern.permute.xlu0 0
        %862 = vperm.xlu0 %861, %v859
        %v863 = vpop.permute.xlu0 %862
        %v865 = vmul.f32 %v863, %v805
        %v866 = vpack.c.bf16 %v865, %v865
        %v867 = vld [vmem:[#allocation18] sm:$0xf]
        %v868 = vld [vmem:[#allocation18 + $0x4] sm:$0xf]
        %v869 = vld [vmem:[#allocation18 + $0x8] sm:$0xf]
        %v870 = vld [vmem:[#allocation18 + $0xc] sm:$0xf]
        %v871 = vld [vmem:[#allocation18 + $0x10] sm:$0xf]
        %v872 = vld [vmem:[#allocation18 + $0x14] sm:$0xf]
        %v873 = vld [vmem:[#allocation18 + $0x18] sm:$0xf]
        %v874 = vld [vmem:[#allocation18 + $0x1c] sm:$0xf]
        %v875 = vld [vmem:[#allocation18 + $0x20] sm:$0xf]
        %v876 = vld [vmem:[#allocation18 + $0x24] sm:$0xf]
        %v877 = vld [vmem:[#allocation18 + $0x28] sm:$0xf]
        %v878 = vld [vmem:[#allocation18 + $0x2c] sm:$0xf]
        %v879 = vld [vmem:[#allocation18 + $0x30] sm:$0xf]
        %v880 = vld [vmem:[#allocation18 + $0x34] sm:$0xf]
        %v881 = vld [vmem:[#allocation18 + $0x38] sm:$0xf]
        %v882 = vld [vmem:[#allocation18 + $0x3c] sm:$0xf]
        %v883 = vld [vmem:[%s11] sm:$0x1]
        %v885 = vperm.slane %v883, 0
        %v903 = vunpack.c.l.b16 %v867
        %v904 = vunpack.c.l.b16 %v868
        %v905 = vunpack.c.l.b16 %v869
        %v906 = vunpack.c.l.b16 %v870
        %v907 = vunpack.c.l.b16 %v871
        %v908 = vunpack.c.l.b16 %v872
        %v909 = vunpack.c.l.b16 %v873
        %v910 = vunpack.c.l.b16 %v874
        %v911 = vunpack.c.l.b16 %v875
        %v912 = vunpack.c.l.b16 %v876
        %v913 = vunpack.c.l.b16 %v877
        %v914 = vunpack.c.l.b16 %v878
        %v915 = vunpack.c.l.b16 %v879
        %v916 = vunpack.c.l.b16 %v880
        %v917 = vunpack.c.l.b16 %v881
        %v918 = vunpack.c.l.b16 %v882
        %v919 = vpack.c.b16 %v904, %v903
        %v920 = vpack.c.b16 %v906, %v905
        %v921 = vpack.c.b16 %v908, %v907
        %v922 = vpack.c.b16 %v910, %v909
        %v923 = vpack.c.b16 %v912, %v911
        %v924 = vpack.c.b16 %v914, %v913
        %v925 = vpack.c.b16 %v916, %v915
        %v926 = vpack.c.b16 %v918, %v917
        %935 = vmatpush.bf16.msra.mxu0 %v926
        %936 = vmatpush.bf16.msra.mxu0 %v925
        %937 = vmatpush.bf16.msra.mxu0 %v924
        %938 = vmatpush.bf16.msra.mxu0 %v923
        %939 = vmatpush.bf16.msra.mxu0 %v922
        %940 = vmatpush.bf16.msra.mxu0 %v921
        %941 = vmatpush.bf16.msra.mxu0 %v920
        %942 = vmatpush.bf16.msra.mxu0 %v919
        %943 = vmatmul.bf16.gmra.mxu0 %v866
        %v944 = vpop.f32.mrf.mxu0
        %v945 = vadd.f32 %v885, %v944
        %v946 = vpop.f32.mrf.mxu0
        %947 = vdwg.mxu0
        %v948 = vmax.f32 %v945, 0.0
        %v949 = vpack.c.bf16 %v948, %v948
        %v950 = vld [vmem:[#allocation20] sm:$0xf]
        %v951 = vld [vmem:[#allocation20 + $0x4] sm:$0xf]
        %v952 = vld [vmem:[#allocation20 + $0x8] sm:$0xf]
        %v953 = vld [vmem:[#allocation20 + $0xc] sm:$0xf]
        %v954 = vld [vmem:[#allocation20 + $0x10] sm:$0xf]
        %v955 = vld [vmem:[#allocation20 + $0x14] sm:$0xf]
        %v956 = vld [vmem:[#allocation20 + $0x18] sm:$0xf]
        %v957 = vld [vmem:[#allocation20 + $0x1c] sm:$0xf]
        %v958 = vld [vmem:[#allocation20 + $0x20] sm:$0xf]
        %v959 = vld [vmem:[#allocation20 + $0x24] sm:$0xf]
        %v960 = vld [vmem:[#allocation20 + $0x28] sm:$0xf]
        %v961 = vld [vmem:[#allocation20 + $0x2c] sm:$0xf]
        %v962 = vld [vmem:[#allocation20 + $0x30] sm:$0xf]
        %v963 = vld [vmem:[#allocation20 + $0x34] sm:$0xf]
        %v964 = vld [vmem:[#allocation20 + $0x38] sm:$0xf]
        %v965 = vld [vmem:[#allocation20 + $0x3c] sm:$0xf]
        %v966 = vld [vmem:[%s13] sm:$0x1]
        %v968 = vperm.slane %v966, 0
        %v986 = vunpack.c.l.b16 %v950
        %v987 = vunpack.c.l.b16 %v951
        %v988 = vunpack.c.l.b16 %v952
        %v989 = vunpack.c.l.b16 %v953
        %v990 = vunpack.c.l.b16 %v954
        %v991 = vunpack.c.l.b16 %v955
        %v992 = vunpack.c.l.b16 %v956
        %v993 = vunpack.c.l.b16 %v957
        %v994 = vunpack.c.l.b16 %v958
        %v995 = vunpack.c.l.b16 %v959
        %v996 = vunpack.c.l.b16 %v960
        %v997 = vunpack.c.l.b16 %v961
        %v998 = vunpack.c.l.b16 %v962
        %v999 = vunpack.c.l.b16 %v963
        %v1000 = vunpack.c.l.b16 %v964
        %v1001 = vunpack.c.l.b16 %v965
        %v1002 = vpack.c.b16 %v987, %v986
        %v1003 = vpack.c.b16 %v989, %v988
        %v1004 = vpack.c.b16 %v991, %v990
        %v1005 = vpack.c.b16 %v993, %v992
        %v1006 = vpack.c.b16 %v995, %v994
        %v1007 = vpack.c.b16 %v997, %v996
        %v1008 = vpack.c.b16 %v999, %v998
        %v1009 = vpack.c.b16 %v1001, %v1000
        %1018 = vmatpush.bf16.msra.mxu0 %v1009
        %1019 = vmatpush.bf16.msra.mxu0 %v1008
        %1020 = vmatpush.bf16.msra.mxu0 %v1007
        %1021 = vmatpush.bf16.msra.mxu0 %v1006
        %1022 = vmatpush.bf16.msra.mxu0 %v1005
        %1023 = vmatpush.bf16.msra.mxu0 %v1004
        %1024 = vmatpush.bf16.msra.mxu0 %v1003
        %1025 = vmatpush.bf16.msra.mxu0 %v1002
        %1026 = vmatmul.bf16.gmra.mxu0 %v949
        %v1027 = vpop.f32.mrf.mxu0
        %v1028 = vadd.f32 %v968, %v1027
        %v1029 = vpop.f32.mrf.mxu0
        %1030 = vdwg.mxu0
        %v1031 = vld [vmem:[%s659] sm:$0x1]
        %v1032 = vld [vmem:[%s668] sm:$0x1]
        %v1033 = vld [vmem:[%s677] sm:$0x1]
        %v1034 = vadd.f32 %v1032, %v1033
        %v1035 = vld [vmem:[%s686] sm:$0x1]
        %v1036 = vadd.f32 %v1034, %v1035
        %v1037 = vld [vmem:[%s695] sm:$0x1]
        %v1038 = vadd.f32 %v1036, %v1037
        %v1039 = vld [vmem:[%s704] sm:$0x1]
        %v1040 = vadd.f32 %v1038, %v1039
        %v1042 = vperm.slane %v1031, 0
        %v1044 = vmul.f32 %v1042, %v1028
        %v1046 = vperm.slane %v1040, 0
        %v1048 = vmul.f32 %v1046, %v1028
        %v1049 = vsub.f32 0.0, %v1048
        %v1050 = vmin.f32 %v1044, 0.0
        %v1051 = vand.u32 2147483647, %v1044
        %v1052 = vsub.f32 0.0, %v1051
        %v1053 = vmul.f32 %v1052, 1.442695
        %v1054 = vpow.pop %v1053
        %v1055 = vadd.f32 %v1054, 1.0
        %v1056 = vlog2.pop %v1055
        %v1057 = vmul.f32 %v1056, 0.6931472
        %v1058 = vmul.f32 -0.5, %v1054
        %v1059 = vadd.f32 %v1058, 1.0
        %v1060 = vmul.f32 %v1059, %v1054
        %v1061 = vand.u32 2147483647, %v1054
        %vm1062 = vcmp.lt.f32.partialorder %v1061, 0.0004427343
        %v1063 = vsel %vm1062, %v1060, %v1057
        %v1064 = vsub.f32 %v1050, %v1063
        %v1065 = vmin.f32 %v1049, 0.0
        %v1066 = vand.u32 2147483647, %v1049
        %v1067 = vsub.f32 0.0, %v1066
        %v1068 = vmul.f32 %v1067, 1.442695
        %v1069 = vpow.pop %v1068
        %v1070 = vadd.f32 %v1069, 1.0
        %v1071 = vlog2.pop %v1070
        %v1072 = vmul.f32 %v1071, 0.6931472
        %v1073 = vmul.f32 -0.5, %v1069
        %v1074 = vadd.f32 %v1073, 1.0
        %v1075 = vmul.f32 %v1074, %v1069
        %v1076 = vand.u32 2147483647, %v1069
        %vm1077 = vcmp.lt.f32.partialorder %v1076, 0.0004427343
        %v1078 = vsel %vm1077, %v1075, %v1072
        %v1079 = vsub.f32 %v1065, %v1078
        %v1080 = vadd.f32 %v1064, %v1079
        %v1081 = vrot.slane %v1080, 4
        %v1082 = vadd.f32 %v1080, %v1081
        %v1083 = vrot.slane %v1082, 2
        %v1084 = vadd.f32 %v1082, %v1083
        %v1085 = vrot.slane %v1084, 1
        %v1086 = vadd.f32 %v1084, %v1085
        %1087 = vst [vmem:[%s780] sm:$0x1] %v1086
        %v1088 = vcvt.f32.s32.to.zero.pseudo %v1031
        %v1089 = vlaneseq
        %v1090 = vand.u32 %v1089, 127
        %vm1091 = vcmask 1040384
        %v1092 = vsel %vm1091, %v1088, 2147483648
        %v1093 = vand.u32 %v1092, 65535
        %v1094 = vshra.s32 %v1092, 16
        %v1095 = vcvt.s32.f32 %v1093
        %v1096 = vcvt.s32.f32 %v1094
        %1097 = vmax.xlane.f32.xlu0 %v1096
        %v1098 = vpop.xlane.xlu0 %1097
        %vm1099 = vcmp.eq.f32.partialorder %v1096, %v1098
        %v1100 = vsel %vm1099, %v1095, -inf
        %1101 = vmax.xlane.f32.xlu0 %v1100
        %v1102 = vpop.xlane.xlu0 %1101
        %v1103 = vcvt.f32.s32 %v1102
        %v1104 = vcvt.f32.s32 %v1098
        %v1105 = vshll.u32 %v1104, 16
        %v1106 = vadd.s32 %v1105, %v1103
        %vm1107 = vcmp.eq.s32.totalorder %v1088, %v1106
        %v1108 = vsel %vm1107, %v1090, 128
        %v1109 = vsel %vm1091, %v1108, 2147483647
        %v1110 = vand.u32 %v1109, 65535
        %v1111 = vshra.s32 %v1109, 16
        %v1112 = vcvt.s32.f32 %v1110
        %v1113 = vcvt.s32.f32 %v1111
        %1114 = vmin.xlane.f32.xlu0 %v1113
        %v1115 = vpop.xlane.xlu0 %1114
        %vm1116 = vcmp.eq.f32.partialorder %v1113, %v1115
        %v1117 = vsel %vm1116, %v1112, inf
        %1118 = vmin.xlane.f32.xlu0 %v1117
        %v1119 = vpop.xlane.xlu0 %1118
        %v1120 = vcvt.f32.s32 %v1119
        %v1121 = vcvt.f32.s32 %v1115
        %v1122 = vshll.u32 %v1121, 16
        %v1123 = vadd.s32 %v1122, %v1120
        %vm1124 = vcmp.eq.s32.totalorder %v1090, %v1123
        %v1125 = vsel %vm1124, %v1086, 0.0
        %v1126 = vsel %vm1091, %v1125, 0.0
        %1127 = vadd.xlane.f32.xlu0 %v1126
        %v1128 = vpop.xlane.xlu0 %1127
        %vm1129 = vcmask 0
        %1130 = vst.msk [vmem:[%s803] sm:$0x1] %vm1129, %v1128
        %s1131 = sand.u32 %s405, 1
        %s1132 = scalar_lea.sflag [#allocation8], %s1131
        %s1133 = sand.u32 %s405, 1
        %s1134 = scalar_lea.vmem [#allocation21], %s1133
        %p1135 = scmp.lt.s32.totalorder %s59, 1
        %s1136 = scalar_select %p1135, %s59, 1
        %s1137 = scalar_lea.vmem %s16, %s1136
        // Predicated region
        $region109: #{tpu_custom_call.1} parent=71 // pred_check
          %p1138 = pneg %p415
        $region110: #{tpu_custom_call.1} parent=71 // pred_check_branch
          %1140 = sbr.rel (%p1138) target = $region112
        $region111: #{tpu_custom_call.1} parent=71 // pred_region
          %1142 = vsyncadd %s1132, 0
          %s1143 = scalar_lea.hbm %s15, %s59
          %s1145 = sshll.u32 %s1134, 4
          %s1146 = int_to_ptr.vmem [resolvable:$true] %s1145
          %s1147 = sshll.u32 %s1143, 4
          %s1148 = int_to_ptr.hbm [resolvable:$true] %s1147
          %1150 = dma.vmem_to_hbm [thread:$0]  %s1146, 16, %s1148, %s1132
        $region112: #{tpu_custom_call.1} parent=71 // pred_fallthru
          _
        // Predicated region
        $region113: #{tpu_custom_call.1} parent=71 // pred_check
          %p1151 = pneg %p441
        $region114: #{tpu_custom_call.1} parent=71 // pred_check_branch
          %1153 = sbr.rel (%p1151) target = $region116
        $region115: #{tpu_custom_call.1} parent=71 // pred_region
          _
        $region116: #{tpu_custom_call.1} parent=71 // pred_fallthru
          _
      $region72: #{tpu_custom_call.1} parent=5 // pred_fallthru
        _
      %p1154 = scmp.le.s32.totalorder 2, %s54
      // Predicated region
      $region117: #{tpu_custom_call.1} parent=5 // pred_check
        %p1155 = pneg %p1154
      $region118: #{tpu_custom_call.1} parent=5 // pred_check_branch
        %1157 = sbr.rel (%p1155) target = $region120
      $region119: #{tpu_custom_call.1} parent=5 // pred_region
        %s1158 = ssub.s32 %s54, 2
        // Predicated region
        $region121: #{tpu_custom_call.1} parent=119 // pred_check
          %p1159 = pneg %p421
        $region122: #{tpu_custom_call.1} parent=119 // pred_check_branch
          %1161 = sbr.rel (%p1159) target = $region124
        $region123: #{tpu_custom_call.1} parent=119 // pred_region
          %s1162 = sand.u32 %s406, 1
          %s1163 = scalar_lea.sflag [#allocation8], %s1162
          %s1164 = sand.u32 %s406, 1
          %s1165 = scalar_lea.vmem [#allocation21], %s1164
          %1167 = dma.done %s1163, 16
        $region124: #{tpu_custom_call.1} parent=119 // pred_fallthru
          _
        // Predicated region
        $region125: #{tpu_custom_call.1} parent=119 // pred_check
          %p1168 = pneg %p447
        $region126: #{tpu_custom_call.1} parent=119 // pred_check_branch
          %1170 = sbr.rel (%p1168) target = $region128
        $region127: #{tpu_custom_call.1} parent=119 // pred_region
          %p1171 = scmp.lt.s32.totalorder %s60, 1
          %s1172 = scalar_select %p1171, %s60, 1
          %s1173 = scalar_lea.vmem %s16, %s1172
        $region128: #{tpu_custom_call.1} parent=119 // pred_fallthru
          _
      $region120: #{tpu_custom_call.1} parent=5 // pred_fallthru
        _
    $region6: #{tpu_custom_call.1} parent=1 // loop_footer
      %s58 = sadd.s32 1, %s54
    $region7: #{tpu_custom_call.1} parent=1 // loop_footer_branch
      %53 = sbr.rel target = $region3
    $region8: #{tpu_custom_call.1} parent=1 // loop_exit
      _
    %1174 = vsyncpa [#allocation7], 1
    %s1175 = scalar_lea.sflag [#allocation7], 1
    %1176 = vsyncpa %s1175, 1
    %1177 = vsyncpa [#allocation10], 1
    %s1178 = scalar_lea.sflag [#allocation10], 1
    %1179 = vsyncpa %s1178, 1
    %1180 = vsyncpa [#allocation13], 1
    %s1181 = scalar_lea.sflag [#allocation13], 1
    %1182 = vsyncpa %s1181, 1
    %1183 = vsyncpa [#allocation16], 1
    %s1184 = scalar_lea.sflag [#allocation16], 1
    %1185 = vsyncpa %s1184, 1
    %1186 = vsyncpa [#allocation19], 1
    %1187 = vsyncpa [#allocation8], 1
    %s1188 = scalar_lea.sflag [#allocation8], 1
    %1189 = vsyncpa %s1188, 1

</llo_original>
